<compile_context>
chip_gen: v5e
topology: v5e:2x2
jax: 0.10.0
libtpu: 0.0.40
codegen_flags: <defaults>
</compile_context>

<pallas_src>
import jax
import jax.numpy as jnp
from jax import lax
from jax.experimental import pallas as pl
from jax.experimental.pallas import tpu as pltpu

LEAKY_SLOPE = 0.1


def _round_up(x, m):
    return (x + m - 1) // m * m


def _pick_row_tile(H):
    # Largest row strip (multiple of 8) that divides H and gives >=2 strips;
    # fall back to the full height.
    for th in (64, 32, 16, 8):
        if H % th == 0 and H // th >= 2:
            return th
    return H


def dbl_kernel(x_ref, w_ref, scale_ref, bias_ref, o_ref):
    """Grid = (batch, cout_tile, row_strip).

    x_ref:     (1, H+2, W+2, Cin_p)  zero-padded NHWC input (full image, lane-dense C)
    w_ref:     (9*Cin_p, TCout)      im2col-folded conv weights, one Cout tile
    scale_ref: (1, TCout)            folded BN scale tile
    bias_ref:  (1, TCout)            folded BN bias tile (includes conv bias)
    o_ref:     (1, TH, W, TCout)     output row-strip x Cout tile
    """
    TH = o_ref.shape[1]
    W = o_ref.shape[2]

    strip = pl.program_id(2)
    row0 = pl.multiple_of(strip * TH, 8)

    # im2col-lite: fold the 3x3 taps into the contraction axis so the MXU sees
    # one deep (9*Cin_p) contraction instead of 9 shallow ones.
    taps = []
    for kh in range(3):
        for kw in range(3):
            taps.append(x_ref[0, pl.ds(row0 + kh, TH), kw:kw + W, :])
    patch = jnp.concatenate(taps, axis=-1)                    # (TH, W, 9*Cin_p)

    acc = lax.dot_general(
        patch, w_ref[...],
        dimension_numbers=(((2,), (0,)), ((), ())),
        preferred_element_type=jnp.float32)                   # (TH, W, TCout) f32

    # Folded BatchNorm (eval mode) + conv bias, then LeakyReLU(0.1); f32 epilogue.
    y = acc * scale_ref[0] + bias_ref[0]
    y = jnp.where(y > 0, y, LEAKY_SLOPE * y)
    o_ref[0] = y.astype(o_ref.dtype)


def dbl_forward(x_nchw, conv_w, conv_b, bn_gamma, bn_beta, bn_mean, bn_var,
                eps=1e-5, compute_dtype=jnp.float32):
    """DBL forward: Conv2d(3x3, stride 1, pad 1, bias) + BN2d(eval) + LeakyReLU(0.1).

    x_nchw: (N, Cin, H, W) float32. Returns (N, Cout, H, W) float32 (PyTorch layout).
    `compute_dtype=jnp.bfloat16` halves HBM/VMEM activation+weight traffic on
    v6e/v7x while keeping f32 accumulation and f32 epilogue/output.
    """
    N, Cin, H, W = x_nchw.shape
    Cout, _, KH, KW = conv_w.shape
    assert (KH, KW) == (3, 3)

    # Lane-dense channel padding (multiples of 128): full MXU lanes, unmasked stores.
    cin_p = _round_up(Cin, 128)
    cout_p = _round_up(Cout, 128)
    t_cout = 128
    th = _pick_row_tile(H)

    # NCHW -> NHWC, plus 1px spatial halo and channel pad in a SINGLE pad pass.
    x_nhwc = jnp.transpose(x_nchw, (0, 2, 3, 1))
    x_pad = jnp.pad(x_nhwc, ((0, 0), (1, 1), (1, 1), (0, cin_p - Cin)))
    x_pad = x_pad.astype(compute_dtype)
    # TODO(synk): in a full YOLO stack keep activations NHWC end-to-end so the
    # NCHW<->NHWC transposes (here only to honor the PyTorch I/O contract) vanish.

    # Weights OIHW -> HWIO -> pad channels -> im2col-folded (9*Cin_p, Cout_p).
    # Row order (kh, kw, cin) matches the tap-concat order in the kernel.
    w_hwio = jnp.transpose(conv_w, (2, 3, 1, 0))
    w_pad = jnp.pad(w_hwio, ((0, 0), (0, 0), (0, cin_p - Cin), (0, cout_p - Cout)))
    w2d = w_pad.reshape(KH * KW * cin_p, cout_p).astype(compute_dtype)

    # Fold BN (eval mode) + conv bias:  BN(conv(x)+b) = s*conv(x) + (beta + s*(b-mean)).
    scale = bn_gamma / jnp.sqrt(bn_var + eps)
    bias = bn_beta + scale * (conv_b - bn_mean)
    scale2d = jnp.pad(scale, (0, cout_p - Cout)).reshape(1, cout_p).astype(jnp.float32)
    bias2d = jnp.pad(bias, (0, cout_p - Cout)).reshape(1, cout_p).astype(jnp.float32)

    grid = (N, cout_p // t_cout, H // th)

    out_nhwc = pl.pallas_call(
        dbl_kernel,
        out_shape=jax.ShapeDtypeStruct((N, H, W, cout_p), jnp.float32),
        grid_spec=pltpu.PrefetchScalarGridSpec(
            num_scalar_prefetch=0,
            grid=grid,
            in_specs=[
                # Full padded image for batch n; block index depends only on n,
                # so it is not re-DMAed across the inner (cout, strip) steps.
                pl.BlockSpec((1, H + 2, W + 2, cin_p), lambda n, j, i: (n, 0, 0, 0)),
                # One Cout tile of folded weights; constant across the innermost
                # row-strip axis -> fetched once per (n, j), reused for all strips.
                pl.BlockSpec((KH * KW * cin_p, t_cout), lambda n, j, i: (0, j)),
                pl.BlockSpec((1, t_cout), lambda n, j, i: (0, j)),
                pl.BlockSpec((1, t_cout), lambda n, j, i: (0, j)),
            ],
            out_specs=pl.BlockSpec((1, th, W, t_cout),
                                   lambda n, j, i: (n, i, 0, j)),
        ),
        compiler_params=pltpu.CompilerParams(
            dimension_semantics=("parallel", "parallel", "parallel"),
            vmem_limit_bytes=32 * 1024 * 1024),
    )(x_pad, w2d, scale2d, bias2d)

    # Crop padded Cout channels and return NCHW (PyTorch module contract).
    return jnp.transpose(out_nhwc[..., :Cout], (0, 3, 1, 2))


if __name__ == "__main__":
    # Small shapes consistent with the module: batch=2, Cin=4, Cout=8, 16x16.
    N, Cin, Cout, H, W = 2, 4, 8, 16, 16
    KH = KW = 3

    key = jax.random.PRNGKey(0)
    k_x, k_w, k_b = jax.random.split(key, 3)

    x = jax.random.normal(k_x, (N, Cin, H, W), dtype=jnp.float32)
    conv_w = 0.1 * jax.random.normal(k_w, (Cout, Cin, KH, KW), dtype=jnp.float32)
    conv_b = 0.05 * jax.random.normal(k_b, (Cout,), dtype=jnp.float32)

    # Deterministic BatchNorm parameters / running stats (eval-mode semantics).
    bn_gamma = 1.0 + 0.1 * jnp.arange(Cout, dtype=jnp.float32)
    bn_beta = 0.01 * jnp.arange(Cout, dtype=jnp.float32)
    bn_mean = 0.05 * jnp.arange(Cout, dtype=jnp.float32)
    bn_var = 1.0 + 0.02 * jnp.arange(Cout, dtype=jnp.float32)

    out = dbl_forward(x, conv_w, conv_b, bn_gamma, bn_beta, bn_mean, bn_var)
    out = jax.block_until_ready(out)

    # Sanity check against a pure-JAX reference (same semantics).
    ref = lax.conv_general_dilated(
        x, conv_w, window_strides=(1, 1), padding=((1, 1), (1, 1)),
        dimension_numbers=("NCHW", "OIHW", "NCHW"))
    ref = ref + conv_b.reshape(1, Cout, 1, 1)
    s = (bn_gamma / jnp.sqrt(bn_var + 1e-5)).reshape(1, Cout, 1, 1)
    ref = s * (ref - bn_mean.reshape(1, Cout, 1, 1)) + bn_beta.reshape(1, Cout, 1, 1)
    ref = jnp.where(ref > 0, ref, 0.1 * ref)

    assert out.shape == (N, Cout, H, W)
    assert jnp.max(jnp.abs(out - ref)) < 1e-4
    print("KERNEL_OK")
</pallas_src>

<mosaic_0001>
module attributes {stable_mosaic.version = 11 : i64} {
  func.func @dbl_kernel(%arg0: i32, %arg1: i32, %arg2: i32, %arg3: memref<1x18x18x128xf32, #tpu.memory_space<vmem>>, %arg4: memref<1152x128xf32, #tpu.memory_space<vmem>>, %arg5: memref<1x128xf32, #tpu.memory_space<vmem>>, %arg6: memref<1x128xf32, #tpu.memory_space<vmem>>, %arg7: memref<1x8x16x128xf32, #tpu.memory_space<vmem>>) attributes {dimension_semantics = [#tpu.dimension_semantics<parallel>, #tpu.dimension_semantics<parallel>, #tpu.dimension_semantics<parallel>], iteration_bounds = array<i64: 2, 1, 2>, scalar_prefetch = 0 : i64, scratch_operands = 0 : i64, tpu.core_type = #tpu.core_type<tc>, window_params = [{transform_indices = @transform_0, window_bounds = array<i64: 1, 18, 18, 128>}, {transform_indices = @transform_1, window_bounds = array<i64: 1152, 128>}, {transform_indices = @transform_2, window_bounds = array<i64: 1, 128>}, {transform_indices = @transform_3, window_bounds = array<i64: 1, 128>}, {transform_indices = @transform_4, window_bounds = array<i64: 1, 8, 16, 128>}]} {
    %c8_i32 = arith.constant 8 : i32
    %0 = arith.muli %arg2, %c8_i32 : i32
    %1 = tpu.assume_multiple %0, 8 : i32
    %c0_i32 = arith.constant 0 : i32
    %2 = arith.addi %1, %c0_i32 : i32
    %c0 = arith.constant 0 : index
    %3 = arith.index_cast %2 : i32 to index
    %c0_0 = arith.constant 0 : index
    %c0_1 = arith.constant 0 : index
    %4 = vector.load %arg3[%c0, %3, %c0_0, %c0_1] : memref<1x18x18x128xf32, #tpu.memory_space<vmem>>, vector<1x8x16x128xf32>
    %5 = vector.shape_cast %4 : vector<1x8x16x128xf32> to vector<8x16x128xf32>
    %c0_i32_2 = arith.constant 0 : i32
    %6 = arith.addi %1, %c0_i32_2 : i32
    %c0_3 = arith.constant 0 : index
    %7 = arith.index_cast %6 : i32 to index
    %c1 = arith.constant 1 : index
    %c0_4 = arith.constant 0 : index
    %8 = vector.load %arg3[%c0_3, %7, %c1, %c0_4] : memref<1x18x18x128xf32, #tpu.memory_space<vmem>>, vector<1x8x16x128xf32>
    %9 = vector.shape_cast %8 : vector<1x8x16x128xf32> to vector<8x16x128xf32>
    %c0_i32_5 = arith.constant 0 : i32
    %10 = arith.addi %1, %c0_i32_5 : i32
    %c0_6 = arith.constant 0 : index
    %11 = arith.index_cast %10 : i32 to index
    %c2 = arith.constant 2 : index
    %c0_7 = arith.constant 0 : index
    %12 = vector.load %arg3[%c0_6, %11, %c2, %c0_7] : memref<1x18x18x128xf32, #tpu.memory_space<vmem>>, vector<1x8x16x128xf32>
    %13 = vector.shape_cast %12 : vector<1x8x16x128xf32> to vector<8x16x128xf32>
    %c1_i32 = arith.constant 1 : i32
    %14 = arith.addi %1, %c1_i32 : i32
    %c0_8 = arith.constant 0 : index
    %15 = arith.index_cast %14 : i32 to index
    %c0_9 = arith.constant 0 : index
    %c0_10 = arith.constant 0 : index
    %16 = vector.load %arg3[%c0_8, %15, %c0_9, %c0_10] : memref<1x18x18x128xf32, #tpu.memory_space<vmem>>, vector<1x8x16x128xf32>
    %17 = vector.shape_cast %16 : vector<1x8x16x128xf32> to vector<8x16x128xf32>
    %c1_i32_11 = arith.constant 1 : i32
    %18 = arith.addi %1, %c1_i32_11 : i32
    %c0_12 = arith.constant 0 : index
    %19 = arith.index_cast %18 : i32 to index
    %c1_13 = arith.constant 1 : index
    %c0_14 = arith.constant 0 : index
    %20 = vector.load %arg3[%c0_12, %19, %c1_13, %c0_14] : memref<1x18x18x128xf32, #tpu.memory_space<vmem>>, vector<1x8x16x128xf32>
    %21 = vector.shape_cast %20 : vector<1x8x16x128xf32> to vector<8x16x128xf32>
    %c1_i32_15 = arith.constant 1 : i32
    %22 = arith.addi %1, %c1_i32_15 : i32
    %c0_16 = arith.constant 0 : index
    %23 = arith.index_cast %22 : i32 to index
    %c2_17 = arith.constant 2 : index
    %c0_18 = arith.constant 0 : index
    %24 = vector.load %arg3[%c0_16, %23, %c2_17, %c0_18] : memref<1x18x18x128xf32, #tpu.memory_space<vmem>>, vector<1x8x16x128xf32>
    %25 = vector.shape_cast %24 : vector<1x8x16x128xf32> to vector<8x16x128xf32>
    %c2_i32 = arith.constant 2 : i32
    %26 = arith.addi %1, %c2_i32 : i32
    %c0_19 = arith.constant 0 : index
    %27 = arith.index_cast %26 : i32 to index
    %c0_20 = arith.constant 0 : index
    %c0_21 = arith.constant 0 : index
    %28 = vector.load %arg3[%c0_19, %27, %c0_20, %c0_21] : memref<1x18x18x128xf32, #tpu.memory_space<vmem>>, vector<1x8x16x128xf32>
    %29 = vector.shape_cast %28 : vector<1x8x16x128xf32> to vector<8x16x128xf32>
    %c2_i32_22 = arith.constant 2 : i32
    %30 = arith.addi %1, %c2_i32_22 : i32
    %c0_23 = arith.constant 0 : index
    %31 = arith.index_cast %30 : i32 to index
    %c1_24 = arith.constant 1 : index
    %c0_25 = arith.constant 0 : index
    %32 = vector.load %arg3[%c0_23, %31, %c1_24, %c0_25] : memref<1x18x18x128xf32, #tpu.memory_space<vmem>>, vector<1x8x16x128xf32>
    %33 = vector.shape_cast %32 : vector<1x8x16x128xf32> to vector<8x16x128xf32>
    %c2_i32_26 = arith.constant 2 : i32
    %34 = arith.addi %1, %c2_i32_26 : i32
    %c0_27 = arith.constant 0 : index
    %35 = arith.index_cast %34 : i32 to index
    %c2_28 = arith.constant 2 : index
    %c0_29 = arith.constant 0 : index
    %36 = vector.load %arg3[%c0_27, %35, %c2_28, %c0_29] : memref<1x18x18x128xf32, #tpu.memory_space<vmem>>, vector<1x8x16x128xf32>
    %37 = vector.shape_cast %36 : vector<1x8x16x128xf32> to vector<8x16x128xf32>
    %38 = tpu.concatenate %5, %9, %13, %17, %21, %25, %29, %33, %37 in 2 : vector<8x16x128xf32>, vector<8x16x128xf32>, vector<8x16x128xf32>, vector<8x16x128xf32>, vector<8x16x128xf32>, vector<8x16x128xf32>, vector<8x16x128xf32>, vector<8x16x128xf32>, vector<8x16x128xf32> -> vector<8x16x1152xf32>
    %c0_30 = arith.constant 0 : index
    %c0_31 = arith.constant 0 : index
    %39 = vector.load %arg4[%c0_30, %c0_31] : memref<1152x128xf32, #tpu.memory_space<vmem>>, vector<1152x128xf32>
    %cst = arith.constant dense<0.000000e+00> : vector<8x16x128xf32>
    %40 = tpu.matmul %38, %39, %cst {dimension_numbers = #tpu.dot_dimension_numbers<[2], [0], [0, 1], [1], [0, 0, 0, 1, 1, 1], [], []>} : vector<8x16x1152xf32>, vector<1152x128xf32>, vector<8x16x128xf32> -> vector<8x16x128xf32>
    %c0_32 = arith.constant 0 : index
    %c0_33 = arith.constant 0 : index
    %41 = vector.load %arg5[%c0_32, %c0_33] : memref<1x128xf32, #tpu.memory_space<vmem>>, vector<1x128xf32>
    %42 = vector.shape_cast %41 : vector<1x128xf32> to vector<128xf32>
    %43 = vector.shape_cast %42 : vector<128xf32> to vector<1x1x128xf32>
    %44 = vector.broadcast %43 : vector<1x1x128xf32> to vector<8x16x128xf32>
    %45 = arith.mulf %40, %44 : vector<8x16x128xf32>
    %c0_34 = arith.constant 0 : index
    %c0_35 = arith.constant 0 : index
    %46 = vector.load %arg6[%c0_34, %c0_35] : memref<1x128xf32, #tpu.memory_space<vmem>>, vector<1x128xf32>
    %47 = vector.shape_cast %46 : vector<1x128xf32> to vector<128xf32>
    %48 = vector.shape_cast %47 : vector<128xf32> to vector<1x1x128xf32>
    %49 = vector.broadcast %48 : vector<1x1x128xf32> to vector<8x16x128xf32>
    %50 = arith.addf %45, %49 : vector<8x16x128xf32>
    %cst_36 = arith.constant 0.000000e+00 : f32
    %51 = vector.broadcast %cst_36 : f32 to vector<8x16x128xf32>
    %52 = arith.cmpf ogt, %50, %51 : vector<8x16x128xf32>
    %cst_37 = arith.constant 1.000000e-01 : f32
    %53 = vector.broadcast %cst_37 : f32 to vector<8x16x128xf32>
    %54 = arith.mulf %53, %50 : vector<8x16x128xf32>
    %55 = arith.select %52, %50, %54 : vector<8x16x128xi1>, vector<8x16x128xf32>
    %c0_38 = arith.constant 0 : index
    %c0_39 = arith.constant 0 : index
    %c0_40 = arith.constant 0 : index
    %c0_41 = arith.constant 0 : index
    %56 = vector.load %arg7[%c0_38, %c0_39, %c0_40, %c0_41] : memref<1x8x16x128xf32, #tpu.memory_space<vmem>>, vector<1x8x16x128xf32>
    %57 = vector.shape_cast %56 : vector<1x8x16x128xf32> to vector<8x16x128xf32>
    %58 = vector.shape_cast %55 : vector<8x16x128xf32> to vector<1x8x16x128xf32>
    tpu.vector_store %arg7[%c0_38, %c0_39, %c0_40, %c0_41], %58 {strides = array<i32>} : memref<1x8x16x128xf32, #tpu.memory_space<vmem>>, vector<1x8x16x128xf32>,
    return
  }
  func.func @transform_0(%arg0: i32, %arg1: i32, %arg2: i32) -> (i32, i32, i32, i32) {
    %c0_i32 = arith.constant 0 : i32
    %c0_i32_0 = arith.constant 0 : i32
    %c0_i32_1 = arith.constant 0 : i32
    %c0_i32_2 = arith.constant 0 : i32
    return %arg0, %c0_i32, %c0_i32_0, %c0_i32_1 : i32, i32, i32, i32
  }
  func.func @transform_1(%arg0: i32, %arg1: i32, %arg2: i32) -> (i32, i32) {
    %c0_i32 = arith.constant 0 : i32
    %c0_i32_0 = arith.constant 0 : i32
    return %c0_i32, %arg1 : i32, i32
  }
  func.func @transform_2(%arg0: i32, %arg1: i32, %arg2: i32) -> (i32, i32) {
    %c0_i32 = arith.constant 0 : i32
    %c0_i32_0 = arith.constant 0 : i32
    return %c0_i32, %arg1 : i32, i32
  }
  func.func @transform_3(%arg0: i32, %arg1: i32, %arg2: i32) -> (i32, i32) {
    %c0_i32 = arith.constant 0 : i32
    %c0_i32_0 = arith.constant 0 : i32
    return %c0_i32, %arg1 : i32, i32
  }
  func.func @transform_4(%arg0: i32, %arg1: i32, %arg2: i32) -> (i32, i32, i32, i32) {
    %c0_i32 = arith.constant 0 : i32
    %c0_i32_0 = arith.constant 0 : i32
    return %arg0, %arg2, %c0_i32, %arg1 : i32, i32, i32, i32
  }
}

</mosaic_0001>

<llo_original>
// kernel: tpu_custom_call.1
$region0: #{tpu_custom_call.1}
  #allocation0 [shape = 'u32[]', space=smem, size = 0x4, offset = 0x4, fixed_abs, tag = 'smem constant byte address 0x4 - core index']
  #allocation1 [shape = 'u32[72,128]{1,0:T(1,128)}', space=vmem, size = 0x9000, scoped, tag = 'internal scratch']
  %s0 = inlined_call_operand.vmem [shape: f32[2,18,18,128], index: 0, kind: input, shape index: {}]
  %s1 = inlined_call_operand.vmem [shape: f32[1152,128], index: 1, kind: input, shape index: {}]
  %s2 = inlined_call_operand.vmem [shape: f32[1,128], index: 2, kind: input, shape index: {}]
  %s3 = inlined_call_operand.vmem [shape: f32[1,128], index: 3, kind: input, shape index: {}]
  %s4 = inlined_call_operand.hbm [shape: f32[2,16,16,128], index: 4, kind: output, shape index: {}]
  %s5 = sld [smem:[#allocation0]]
  $region49: #{tpu_custom_call.1} parent=0
    _
  %s7 = ssub.s32 1, %s5
  %s8 = scalar_select 0, %s7, %s5
  $region1: #{tpu_custom_call.1} parent=0
    #allocation2 [shape = 'u8[131072]{0}', space=vmem, size = 0x20000, scoped, tag = 'output window, operand 0']
    #allocation3 [shape = 's32[2]{0}', space=sflag, size = 0x8, scoped, tag = 'scoped memory for tpu_custom_call.1']
    %9 = vsyncpa [#allocation3], 0
    %s10 = scalar_lea.sflag [#allocation3], 1
    %11 = vsyncpa %s10, 0
    loop: start=0, step=1, limit=6
    $region2: #{tpu_custom_call.1} parent=1 // loop_pre_header
      _
    $region3: #{tpu_custom_call.1} parent=1 // loop_header
      %s13 = sphi 0, %s17
      %p14 = scmp.ge.s32.totalorder %s13, 6
      %s20 = sphi 0, %s39
      %s21 = sphi 0, %s35
      %s22 = sphi 0, %s31
      %s23 = sphi 0, %s20
      %s24 = sphi 0, %s21
      %s25 = sphi 0, %s22
      %s26 = sphi 0, %s23
      %s27 = sphi 0, %s24
      %s28 = sphi 0, %s25
      %s42 = sphi 0, %s44
      %s45 = sphi 0, %s42
      %s46 = sphi 0, %s45
      %s62 = sphi 0, %s46
      %s68 = sphi 0, %s70
      %s71 = sphi 0, %s68
      %s72 = sphi 0, %s71
      %s88 = sphi 0, %s72
      %s94 = sphi 0, %s96
      %s97 = sphi 0, %s94
      %s98 = sphi 0, %s97
      %s114 = sphi 0, %s98
      %s120 = sphi 0, %s122
      %s123 = sphi 0, %s120
      %s124 = sphi 0, %s123
      %s140 = sphi 0, %s124
      %s150 = sphi 0, %s152
      %s153 = sphi 0, %s150
      %s154 = sphi 0, %s153
      %s170 = sphi 0, %s154
    $region4: #{tpu_custom_call.1} parent=1 // loop_header_branch
      %16 = sbr.rel (%p14) target = $region8
    $region5: #{tpu_custom_call.1} parent=1 // loop_body
      %s18 = ssub.s32 %s13, 1
      %s19 = ssub.s32 %s13, 2
      %s29 = sadd.s32 1, %s22
      %p30 = scmp.ge.s32.totalorder %s29, 2
      %s31 = scalar_select %p30, 0, %s29
      %s32 = sadd.s32 1, %s21
      %s33 = scalar_select %p30, %s32, %s21
      %p34 = scmp.ge.s32.totalorder %s33, 1
      %s35 = scalar_select %p34, 0, %s33
      %s36 = sadd.s32 1, %s20
      %s37 = scalar_select %p34, %s36, %s20
      %p38 = scmp.ge.s32.totalorder %s37, 2
      %s39 = scalar_select %p38, 0, %s37
      %s40 = ssub.s32 %s20, %s39
      %p41 = scmp.eq.s32.totalorder %s40, 0
      %s43 = sadd.s32 %s42, 1
      %s44 = scalar_select %p41, %s42, %s43
      %p47 = pneg %p41
      %p48 = scmp.eq.s32.totalorder %s13, 3
      %p49 = por %p47, %p48
      %p50 = scmp.ne.s32.totalorder %s42, %s45
      %p51 = scmp.eq.s32.totalorder %s13, 0
      %p52 = por %p50, %p51
      %p53 = scmp.ne.s32.totalorder %s42, %s45
      %p54 = scmp.eq.s32.totalorder %s18, 3
      %p55 = por %p53, %p54
      %p56 = scmp.ne.s32.totalorder %s45, %s46
      %p57 = scmp.eq.s32.totalorder %s18, 0
      %p58 = por %p56, %p57
      %p59 = scmp.ne.s32.totalorder %s45, %s46
      %p60 = scmp.eq.s32.totalorder %s19, 3
      %p61 = por %p59, %p60
      %p63 = scmp.ne.s32.totalorder %s46, %s62
      %p64 = scmp.eq.s32.totalorder %s19, 0
      %p65 = por %p63, %p64
      %s66 = ssub.s32 %s21, %s35
      %p67 = scmp.eq.s32.totalorder %s66, 0
      %s69 = sadd.s32 %s68, 1
      %s70 = scalar_select %p67, %s68, %s69
      %p73 = pneg %p67
      %p74 = scmp.eq.s32.totalorder %s13, 3
      %p75 = por %p73, %p74
      %p76 = scmp.ne.s32.totalorder %s68, %s71
      %p77 = scmp.eq.s32.totalorder %s13, 0
      %p78 = por %p76, %p77
      %p79 = scmp.ne.s32.totalorder %s68, %s71
      %p80 = scmp.eq.s32.totalorder %s18, 3
      %p81 = por %p79, %p80
      %p82 = scmp.ne.s32.totalorder %s71, %s72
      %p83 = scmp.eq.s32.totalorder %s18, 0
      %p84 = por %p82, %p83
      %p85 = scmp.ne.s32.totalorder %s71, %s72
      %p86 = scmp.eq.s32.totalorder %s19, 3
      %p87 = por %p85, %p86
      %p89 = scmp.ne.s32.totalorder %s72, %s88
      %p90 = scmp.eq.s32.totalorder %s19, 0
      %p91 = por %p89, %p90
      %s92 = ssub.s32 %s21, %s35
      %p93 = scmp.eq.s32.totalorder %s92, 0
      %s95 = sadd.s32 %s94, 1
      %s96 = scalar_select %p93, %s94, %s95
      %p99 = pneg %p93
      %p100 = scmp.eq.s32.totalorder %s13, 3
      %p101 = por %p99, %p100
      %p102 = scmp.ne.s32.totalorder %s94, %s97
      %p103 = scmp.eq.s32.totalorder %s13, 0
      %p104 = por %p102, %p103
      %p105 = scmp.ne.s32.totalorder %s94, %s97
      %p106 = scmp.eq.s32.totalorder %s18, 3
      %p107 = por %p105, %p106
      %p108 = scmp.ne.s32.totalorder %s97, %s98
      %p109 = scmp.eq.s32.totalorder %s18, 0
      %p110 = por %p108, %p109
      %p111 = scmp.ne.s32.totalorder %s97, %s98
      %p112 = scmp.eq.s32.totalorder %s19, 3
      %p113 = por %p111, %p112
      %p115 = scmp.ne.s32.totalorder %s98, %s114
      %p116 = scmp.eq.s32.totalorder %s19, 0
      %p117 = por %p115, %p116
      %s118 = ssub.s32 %s21, %s35
      %p119 = scmp.eq.s32.totalorder %s118, 0
      %s121 = sadd.s32 %s120, 1
      %s122 = scalar_select %p119, %s120, %s121
      %p125 = pneg %p119
      %p126 = scmp.eq.s32.totalorder %s13, 3
      %p127 = por %p125, %p126
      %p128 = scmp.ne.s32.totalorder %s120, %s123
      %p129 = scmp.eq.s32.totalorder %s13, 0
      %p130 = por %p128, %p129
      %p131 = scmp.ne.s32.totalorder %s120, %s123
      %p132 = scmp.eq.s32.totalorder %s18, 3
      %p133 = por %p131, %p132
      %p134 = scmp.ne.s32.totalorder %s123, %s124
      %p135 = scmp.eq.s32.totalorder %s18, 0
      %p136 = por %p134, %p135
      %p137 = scmp.ne.s32.totalorder %s123, %s124
      %p138 = scmp.eq.s32.totalorder %s19, 3
      %p139 = por %p137, %p138
      %p141 = scmp.ne.s32.totalorder %s124, %s140
      %p142 = scmp.eq.s32.totalorder %s19, 0
      %p143 = por %p141, %p142
      %s144 = ssub.s32 %s20, %s39
      %s145 = ssub.s32 %s22, %s31
      %s146 = sor.u32 %s144, %s145
      %s147 = ssub.s32 %s21, %s35
      %s148 = sor.u32 %s146, %s147
      %p149 = scmp.eq.s32.totalorder %s148, 0
      %s151 = sadd.s32 %s150, 1
      %s152 = scalar_select %p149, %s150, %s151
      %p155 = pneg %p149
      %p156 = scmp.eq.s32.totalorder %s13, 3
      %p157 = por %p155, %p156
      %p158 = scmp.ne.s32.totalorder %s150, %s153
      %p159 = scmp.eq.s32.totalorder %s13, 0
      %p160 = por %p158, %p159
      %p161 = scmp.ne.s32.totalorder %s150, %s153
      %p162 = scmp.eq.s32.totalorder %s18, 3
      %p163 = por %p161, %p162
      %p164 = scmp.ne.s32.totalorder %s153, %s154
      %p165 = scmp.eq.s32.totalorder %s18, 0
      %p166 = por %p164, %p165
      %p167 = scmp.ne.s32.totalorder %s153, %s154
      %p168 = scmp.eq.s32.totalorder %s19, 3
      %p169 = por %p167, %p168
      %p171 = scmp.ne.s32.totalorder %s154, %s170
      %p172 = scmp.eq.s32.totalorder %s19, 0
      %p173 = por %p171, %p172
      %p174 = scmp.le.s32.totalorder 1, %s13
      %p175 = scmp.lt.s32.totalorder %s13, 5
      %p176 = pnand %p174, %p175
      %p177 = pneg %p176
      // Predicated region
      $region9: #{tpu_custom_call.1} parent=5 // pred_check
        _
      $region10: #{tpu_custom_call.1} parent=5 // pred_check_branch
        %179 = sbr.rel (%p176) target = $region12
      $region11: #{tpu_custom_call.1} parent=5 // pred_region
        %s180 = ssub.s32 %s13, 1
        // Predicated region
        $region13: #{tpu_custom_call.1} parent=11 // pred_check
          %p181 = pneg %p84
        $region14: #{tpu_custom_call.1} parent=11 // pred_check_branch
          %183 = sbr.rel (%p181) target = $region16
        $region15: #{tpu_custom_call.1} parent=11 // pred_region
          %p184 = scmp.lt.s32.totalorder %s24, 0
          %s185 = scalar_select %p184, %s24, 0
          %s186 = smul.addr %s185, 8
          %s187 = scalar_lea.vmem %s1, %s186
        $region16: #{tpu_custom_call.1} parent=11 // pred_fallthru
          _
        // Predicated region
        $region17: #{tpu_custom_call.1} parent=11 // pred_check
          %p188 = pneg %p110
        $region18: #{tpu_custom_call.1} parent=11 // pred_check_branch
          %190 = sbr.rel (%p188) target = $region20
        $region19: #{tpu_custom_call.1} parent=11 // pred_region
          %p191 = scmp.lt.s32.totalorder %s24, 0
          %s192 = scalar_select %p191, %s24, 0
          %s193 = scalar_lea.vmem %s2, %s192
        $region20: #{tpu_custom_call.1} parent=11 // pred_fallthru
          _
        // Predicated region
        $region21: #{tpu_custom_call.1} parent=11 // pred_check
          %p194 = pneg %p136
        $region22: #{tpu_custom_call.1} parent=11 // pred_check_branch
          %196 = sbr.rel (%p194) target = $region24
        $region23: #{tpu_custom_call.1} parent=11 // pred_region
          %p197 = scmp.lt.s32.totalorder %s24, 0
          %s198 = scalar_select %p197, %s24, 0
          %s199 = scalar_lea.vmem %s3, %s198
        $region24: #{tpu_custom_call.1} parent=11 // pred_fallthru
          _
      $region12: #{tpu_custom_call.1} parent=5 // pred_fallthru
        _
      %p200 = scmp.lt.s32.totalorder %s13, 4
      // Predicated region
      $region25: #{tpu_custom_call.1} parent=5 // pred_check
        %p201 = pneg %p200
      $region26: #{tpu_custom_call.1} parent=5 // pred_check_branch
        %203 = sbr.rel (%p201) target = $region28
      $region27: #{tpu_custom_call.1} parent=5 // pred_region
        // Predicated region
        $region29: #{tpu_custom_call.1} parent=27 // pred_check
          %p204 = pneg %p52
        $region30: #{tpu_custom_call.1} parent=27 // pred_check_branch
          %206 = sbr.rel (%p204) target = $region32
        $region31: #{tpu_custom_call.1} parent=27 // pred_region
          %p207 = scmp.lt.s32.totalorder %s20, 1
          %s208 = scalar_select %p207, %s20, 1
          %s209 = smul.addr %s208, 54
          %s210 = smul.addr %s209, 8
          %s211 = scalar_lea.vmem %s0, %s210
        $region32: #{tpu_custom_call.1} parent=27 // pred_fallthru
          _
      $region28: #{tpu_custom_call.1} parent=5 // pred_fallthru
        _
      %p212 = scmp.le.s32.totalorder 1, %s13
      %p213 = scmp.lt.s32.totalorder %s13, 5
      %p214 = pnand %p212, %p213
      %p215 = pneg %p214
      // Predicated region
      $region33: #{tpu_custom_call.1} parent=5 // pred_check
        _
      $region34: #{tpu_custom_call.1} parent=5 // pred_check_branch
        %217 = sbr.rel (%p214) target = $region36
      $region35: #{tpu_custom_call.1} parent=5 // pred_region
        %s218 = ssub.s32 %s13, 1
        %p219 = scmp.lt.s32.totalorder %s23, 1
        %s220 = scalar_select %p219, %s23, 1
        %s221 = smul.addr %s220, 54
        %s222 = smul.addr %s221, 8
        %s223 = scalar_lea.vmem %s0, %s222
        %p224 = pneg %p58
        %p225 = pneg %p55
        %p226 = scmp.lt.s32.totalorder %s24, 0
        %s227 = scalar_select %p226, %s24, 0
        %s228 = smul.addr %s227, 8
        %s229 = scalar_lea.vmem %s1, %s228
        %p230 = pneg %p84
        %p231 = pneg %p81
        %p232 = scmp.lt.s32.totalorder %s24, 0
        %s233 = scalar_select %p232, %s24, 0
        %s234 = scalar_lea.vmem %s2, %s233
        %p235 = pneg %p110
        %p236 = pneg %p107
        %p237 = scmp.lt.s32.totalorder %s24, 0
        %s238 = scalar_select %p237, %s24, 0
        %s239 = scalar_lea.vmem %s3, %s238
        %p240 = pneg %p136
        %p241 = pneg %p133
        %p242 = pneg %p166
        %p243 = pneg %p163
        %s244 = sand.u32 %s153, 1
        %s245 = scalar_lea.sflag [#allocation3], %s244
        %s246 = sand.u32 %s153, 1
        %s247 = smul.addr %s246, 128
        %s248 = scalar_lea.vmem [#allocation2], %s247
        %p249 = scmp.lt.s32.totalorder %s23, 1
        %s250 = scalar_select %p249, %s23, 1
        %s251 = smul.addr %s250, 54
        %s252 = smul.addr %s251, 8
        %s253 = scalar_lea.vmem %s0, %s252
        %p254 = scmp.lt.s32.totalorder %s24, 0
        %s255 = scalar_select %p254, %s24, 0
        %s256 = smul.addr %s255, 8
        %s257 = scalar_lea.vmem %s1, %s256
        %p258 = scmp.lt.s32.totalorder %s24, 0
        %s259 = scalar_select %p258, %s24, 0
        %s260 = scalar_lea.vmem %s2, %s259
        %p261 = scmp.lt.s32.totalorder %s24, 0
        %s262 = scalar_select %p261, %s24, 0
        %s263 = scalar_lea.vmem %s3, %s262
        %s264 = smul.u32 8, %s25
        %s265 = smul.u32 %s25, 8
        %s266 = smul.u32 %s265, 24
        %s267 = scalar_lea.vmem %s253, %s266
        %v268 = vld [vmem:[%s267] sm:$0xff]
        %v269 = vld [vmem:[%s267 + $0x8] sm:$0xff]
        %v270 = vld [vmem:[%s267 + $0x18] sm:$0xff]
        %v271 = vld [vmem:[%s267 + $0x20] sm:$0xff]
        %v272 = vld [vmem:[%s267 + $0x30] sm:$0xff]
        %v273 = vld [vmem:[%s267 + $0x38] sm:$0xff]
        %v274 = vld [vmem:[%s267 + $0x48] sm:$0xff]
        %v275 = vld [vmem:[%s267 + $0x50] sm:$0xff]
        %v276 = vld [vmem:[%s267 + $0x60] sm:$0xff]
        %v277 = vld [vmem:[%s267 + $0x68] sm:$0xff]
        %v278 = vld [vmem:[%s267 + $0x78] sm:$0xff]
        %v279 = vld [vmem:[%s267 + $0x80] sm:$0xff]
        %v280 = vld [vmem:[%s267 + $0x90] sm:$0xff]
        %v281 = vld [vmem:[%s267 + $0x98] sm:$0xff]
        %v282 = vld [vmem:[%s267 + $0xa8] sm:$0xff]
        %v283 = vld [vmem:[%s267 + $0xb0] sm:$0xff]
        %v284 = vld [vmem:[%s267 + $0x1] sm:$0xff]
        %v285 = vld [vmem:[%s267 + $0x9] sm:$0xff]
        %v286 = vld [vmem:[%s267 + $0x19] sm:$0xff]
        %v287 = vld [vmem:[%s267 + $0x21] sm:$0xff]
        %v288 = vld [vmem:[%s267 + $0x31] sm:$0xff]
        %v289 = vld [vmem:[%s267 + $0x39] sm:$0xff]
        %v290 = vld [vmem:[%s267 + $0x49] sm:$0xff]
        %v291 = vld [vmem:[%s267 + $0x51] sm:$0xff]
        %v292 = vld [vmem:[%s267 + $0x61] sm:$0xff]
        %v293 = vld [vmem:[%s267 + $0x69] sm:$0xff]
        %v294 = vld [vmem:[%s267 + $0x79] sm:$0xff]
        %v295 = vld [vmem:[%s267 + $0x81] sm:$0xff]
        %v296 = vld [vmem:[%s267 + $0x91] sm:$0xff]
        %v297 = vld [vmem:[%s267 + $0x99] sm:$0xff]
        %v298 = vld [vmem:[%s267 + $0xa9] sm:$0xff]
        %v299 = vld [vmem:[%s267 + $0xb1] sm:$0xff]
        %v300 = vld [vmem:[%s267 + $0x2] sm:$0xff]
        %v301 = vld [vmem:[%s267 + $0xa] sm:$0xff]
        %v302 = vld [vmem:[%s267 + $0x1a] sm:$0xff]
        %v303 = vld [vmem:[%s267 + $0x22] sm:$0xff]
        %v304 = vld [vmem:[%s267 + $0x32] sm:$0xff]
        %v305 = vld [vmem:[%s267 + $0x3a] sm:$0xff]
        %v306 = vld [vmem:[%s267 + $0x4a] sm:$0xff]
        %v307 = vld [vmem:[%s267 + $0x52] sm:$0xff]
        %v308 = vld [vmem:[%s267 + $0x62] sm:$0xff]
        %v309 = vld [vmem:[%s267 + $0x6a] sm:$0xff]
        %v310 = vld [vmem:[%s267 + $0x7a] sm:$0xff]
        %v311 = vld [vmem:[%s267 + $0x82] sm:$0xff]
        %v312 = vld [vmem:[%s267 + $0x92] sm:$0xff]
        %v313 = vld [vmem:[%s267 + $0x9a] sm:$0xff]
        %v314 = vld [vmem:[%s267 + $0xaa] sm:$0xff]
        %v315 = vld [vmem:[%s267 + $0xb2] sm:$0xff]
        %s316 = sadd.s32 %s265, 1
        %s317 = smul.u32 %s316, 24
        %s318 = scalar_lea.vmem %s253, %s317
        %v319 = vld [vmem:[%s318] sm:$0xff]
        %v320 = vld [vmem:[%s318 + $0x8] sm:$0xff]
        %v321 = vld [vmem:[%s318 + $0x18] sm:$0xff]
        %v322 = vld [vmem:[%s318 + $0x20] sm:$0xff]
        %v323 = vld [vmem:[%s318 + $0x30] sm:$0xff]
        %v324 = vld [vmem:[%s318 + $0x38] sm:$0xff]
        %v325 = vld [vmem:[%s318 + $0x48] sm:$0xff]
        %v326 = vld [vmem:[%s318 + $0x50] sm:$0xff]
        %v327 = vld [vmem:[%s318 + $0x60] sm:$0xff]
        %v328 = vld [vmem:[%s318 + $0x68] sm:$0xff]
        %v329 = vld [vmem:[%s318 + $0x78] sm:$0xff]
        %v330 = vld [vmem:[%s318 + $0x80] sm:$0xff]
        %v331 = vld [vmem:[%s318 + $0x90] sm:$0xff]
        %v332 = vld [vmem:[%s318 + $0x98] sm:$0xff]
        %v333 = vld [vmem:[%s318 + $0xa8] sm:$0xff]
        %v334 = vld [vmem:[%s318 + $0xb0] sm:$0xff]
        %v335 = vld [vmem:[%s318 + $0x1] sm:$0xff]
        %v336 = vld [vmem:[%s318 + $0x9] sm:$0xff]
        %v337 = vld [vmem:[%s318 + $0x19] sm:$0xff]
        %v338 = vld [vmem:[%s318 + $0x21] sm:$0xff]
        %v339 = vld [vmem:[%s318 + $0x31] sm:$0xff]
        %v340 = vld [vmem:[%s318 + $0x39] sm:$0xff]
        %v341 = vld [vmem:[%s318 + $0x49] sm:$0xff]
        %v342 = vld [vmem:[%s318 + $0x51] sm:$0xff]
        %v343 = vld [vmem:[%s318 + $0x61] sm:$0xff]
        %v344 = vld [vmem:[%s318 + $0x69] sm:$0xff]
        %v345 = vld [vmem:[%s318 + $0x79] sm:$0xff]
        %v346 = vld [vmem:[%s318 + $0x81] sm:$0xff]
        %v347 = vld [vmem:[%s318 + $0x91] sm:$0xff]
        %v348 = vld [vmem:[%s318 + $0x99] sm:$0xff]
        %v349 = vld [vmem:[%s318 + $0xa9] sm:$0xff]
        %v350 = vld [vmem:[%s318 + $0xb1] sm:$0xff]
        %v351 = vld [vmem:[%s318 + $0x2] sm:$0xff]
        %v352 = vld [vmem:[%s318 + $0xa] sm:$0xff]
        %v353 = vld [vmem:[%s318 + $0x1a] sm:$0xff]
        %v354 = vld [vmem:[%s318 + $0x22] sm:$0xff]
        %v355 = vld [vmem:[%s318 + $0x32] sm:$0xff]
        %v356 = vld [vmem:[%s318 + $0x3a] sm:$0xff]
        %v357 = vld [vmem:[%s318 + $0x4a] sm:$0xff]
        %v358 = vld [vmem:[%s318 + $0x52] sm:$0xff]
        %v359 = vld [vmem:[%s318 + $0x62] sm:$0xff]
        %v360 = vld [vmem:[%s318 + $0x6a] sm:$0xff]
        %v361 = vld [vmem:[%s318 + $0x7a] sm:$0xff]
        %v362 = vld [vmem:[%s318 + $0x82] sm:$0xff]
        %v363 = vld [vmem:[%s318 + $0x92] sm:$0xff]
        %v364 = vld [vmem:[%s318 + $0x9a] sm:$0xff]
        %v365 = vld [vmem:[%s318 + $0xaa] sm:$0xff]
        %v366 = vld [vmem:[%s318 + $0xb2] sm:$0xff]
        %s367 = sadd.s32 %s265, 2
        %s368 = smul.u32 %s367, 24
        %s369 = scalar_lea.vmem %s253, %s368
        %v370 = vld [vmem:[%s369] sm:$0xff]
        %v371 = vld [vmem:[%s369 + $0x8] sm:$0xff]
        %v372 = vld [vmem:[%s369 + $0x18] sm:$0xff]
        %v373 = vld [vmem:[%s369 + $0x20] sm:$0xff]
        %v374 = vld [vmem:[%s369 + $0x30] sm:$0xff]
        %v375 = vld [vmem:[%s369 + $0x38] sm:$0xff]
        %v376 = vld [vmem:[%s369 + $0x48] sm:$0xff]
        %v377 = vld [vmem:[%s369 + $0x50] sm:$0xff]
        %v378 = vld [vmem:[%s369 + $0x60] sm:$0xff]
        %v379 = vld [vmem:[%s369 + $0x68] sm:$0xff]
        %v380 = vld [vmem:[%s369 + $0x78] sm:$0xff]
        %v381 = vld [vmem:[%s369 + $0x80] sm:$0xff]
        %v382 = vld [vmem:[%s369 + $0x90] sm:$0xff]
        %v383 = vld [vmem:[%s369 + $0x98] sm:$0xff]
        %v384 = vld [vmem:[%s369 + $0xa8] sm:$0xff]
        %v385 = vld [vmem:[%s369 + $0xb0] sm:$0xff]
        %v386 = vld [vmem:[%s369 + $0x1] sm:$0xff]
        %v387 = vld [vmem:[%s369 + $0x9] sm:$0xff]
        %v388 = vld [vmem:[%s369 + $0x19] sm:$0xff]
        %v389 = vld [vmem:[%s369 + $0x21] sm:$0xff]
        %v390 = vld [vmem:[%s369 + $0x31] sm:$0xff]
        %v391 = vld [vmem:[%s369 + $0x39] sm:$0xff]
        %v392 = vld [vmem:[%s369 + $0x49] sm:$0xff]
        %v393 = vld [vmem:[%s369 + $0x51] sm:$0xff]
        %v394 = vld [vmem:[%s369 + $0x61] sm:$0xff]
        %v395 = vld [vmem:[%s369 + $0x69] sm:$0xff]
        %v396 = vld [vmem:[%s369 + $0x79] sm:$0xff]
        %v397 = vld [vmem:[%s369 + $0x81] sm:$0xff]
        %v398 = vld [vmem:[%s369 + $0x91] sm:$0xff]
        %v399 = vld [vmem:[%s369 + $0x99] sm:$0xff]
        %v400 = vld [vmem:[%s369 + $0xa9] sm:$0xff]
        %v401 = vld [vmem:[%s369 + $0xb1] sm:$0xff]
        %v402 = vld [vmem:[%s369 + $0x2] sm:$0xff]
        %v403 = vld [vmem:[%s369 + $0xa] sm:$0xff]
        %v404 = vld [vmem:[%s369 + $0x1a] sm:$0xff]
        %v405 = vld [vmem:[%s369 + $0x22] sm:$0xff]
        %v406 = vld [vmem:[%s369 + $0x32] sm:$0xff]
        %v407 = vld [vmem:[%s369 + $0x3a] sm:$0xff]
        %v408 = vld [vmem:[%s369 + $0x4a] sm:$0xff]
        %v409 = vld [vmem:[%s369 + $0x52] sm:$0xff]
        %v410 = vld [vmem:[%s369 + $0x62] sm:$0xff]
        %v411 = vld [vmem:[%s369 + $0x6a] sm:$0xff]
        %v412 = vld [vmem:[%s369 + $0x7a] sm:$0xff]
        %v413 = vld [vmem:[%s369 + $0x82] sm:$0xff]
        %v414 = vld [vmem:[%s369 + $0x92] sm:$0xff]
        %v415 = vld [vmem:[%s369 + $0x9a] sm:$0xff]
        %v416 = vld [vmem:[%s369 + $0xaa] sm:$0xff]
        %v417 = vld [vmem:[%s369 + $0xb2] sm:$0xff]
        %v418 = vld [vmem:[%s257] sm:$0xff]
        %v419 = vld [vmem:[%s257 + $0x8] sm:$0xff]
        %v420 = vld [vmem:[%s257 + $0x10] sm:$0xff]
        %v421 = vld [vmem:[%s257 + $0x18] sm:$0xff]
        %v422 = vld [vmem:[%s257 + $0x20] sm:$0xff]
        %v423 = vld [vmem:[%s257 + $0x28] sm:$0xff]
        %v424 = vld [vmem:[%s257 + $0x30] sm:$0xff]
        %v425 = vld [vmem:[%s257 + $0x38] sm:$0xff]
        %v426 = vld [vmem:[%s257 + $0x40] sm:$0xff]
        %v427 = vld [vmem:[%s257 + $0x48] sm:$0xff]
        %v428 = vld [vmem:[%s257 + $0x50] sm:$0xff]
        %v429 = vld [vmem:[%s257 + $0x58] sm:$0xff]
        %v430 = vld [vmem:[%s257 + $0x60] sm:$0xff]
        %v431 = vld [vmem:[%s257 + $0x68] sm:$0xff]
        %v432 = vld [vmem:[%s257 + $0x70] sm:$0xff]
        %v433 = vld [vmem:[%s257 + $0x78] sm:$0xff]
        %v434 = vld [vmem:[%s257 + $0x80] sm:$0xff]
        %v435 = vld [vmem:[%s257 + $0x88] sm:$0xff]
        %v436 = vld [vmem:[%s257 + $0x90] sm:$0xff]
        %v437 = vld [vmem:[%s257 + $0x98] sm:$0xff]
        %v438 = vld [vmem:[%s257 + $0xa0] sm:$0xff]
        %v439 = vld [vmem:[%s257 + $0xa8] sm:$0xff]
        %v440 = vld [vmem:[%s257 + $0xb0] sm:$0xff]
        %v441 = vld [vmem:[%s257 + $0xb8] sm:$0xff]
        %v442 = vld [vmem:[%s257 + $0xc0] sm:$0xff]
        %v443 = vld [vmem:[%s257 + $0xc8] sm:$0xff]
        %v444 = vld [vmem:[%s257 + $0xd0] sm:$0xff]
        %v445 = vld [vmem:[%s257 + $0xd8] sm:$0xff]
        %v446 = vld [vmem:[%s257 + $0xe0] sm:$0xff]
        %v447 = vld [vmem:[%s257 + $0xe8] sm:$0xff]
        %v448 = vld [vmem:[%s257 + $0xf0] sm:$0xff]
        %v449 = vld [vmem:[%s257 + $0xf8] sm:$0xff]
        %v450 = vld [vmem:[%s257 + $0x100] sm:$0xff]
        %v451 = vld [vmem:[%s257 + $0x108] sm:$0xff]
        %v452 = vld [vmem:[%s257 + $0x110] sm:$0xff]
        %v453 = vld [vmem:[%s257 + $0x118] sm:$0xff]
        %v454 = vld [vmem:[%s257 + $0x120] sm:$0xff]
        %v455 = vld [vmem:[%s257 + $0x128] sm:$0xff]
        %v456 = vld [vmem:[%s257 + $0x130] sm:$0xff]
        %v457 = vld [vmem:[%s257 + $0x138] sm:$0xff]
        %v458 = vld [vmem:[%s257 + $0x140] sm:$0xff]
        %v459 = vld [vmem:[%s257 + $0x148] sm:$0xff]
        %v460 = vld [vmem:[%s257 + $0x150] sm:$0xff]
        %v461 = vld [vmem:[%s257 + $0x158] sm:$0xff]
        %v462 = vld [vmem:[%s257 + $0x160] sm:$0xff]
        %v463 = vld [vmem:[%s257 + $0x168] sm:$0xff]
        %v464 = vld [vmem:[%s257 + $0x170] sm:$0xff]
        %v465 = vld [vmem:[%s257 + $0x178] sm:$0xff]
        %v466 = vld [vmem:[%s257 + $0x180] sm:$0xff]
        %v467 = vld [vmem:[%s257 + $0x188] sm:$0xff]
        %v468 = vld [vmem:[%s257 + $0x190] sm:$0xff]
        %v469 = vld [vmem:[%s257 + $0x198] sm:$0xff]
        %v470 = vld [vmem:[%s257 + $0x1a0] sm:$0xff]
        %v471 = vld [vmem:[%s257 + $0x1a8] sm:$0xff]
        %v472 = vld [vmem:[%s257 + $0x1b0] sm:$0xff]
        %v473 = vld [vmem:[%s257 + $0x1b8] sm:$0xff]
        %v474 = vld [vmem:[%s257 + $0x1c0] sm:$0xff]
        %v475 = vld [vmem:[%s257 + $0x1c8] sm:$0xff]
        %v476 = vld [vmem:[%s257 + $0x1d0] sm:$0xff]
        %v477 = vld [vmem:[%s257 + $0x1d8] sm:$0xff]
        %v478 = vld [vmem:[%s257 + $0x1e0] sm:$0xff]
        %v479 = vld [vmem:[%s257 + $0x1e8] sm:$0xff]
        %v480 = vld [vmem:[%s257 + $0x1f0] sm:$0xff]
        %v481 = vld [vmem:[%s257 + $0x1f8] sm:$0xff]
        %v482 = vld [vmem:[%s257 + $0x200] sm:$0xff]
        %v483 = vld [vmem:[%s257 + $0x208] sm:$0xff]
        %v484 = vld [vmem:[%s257 + $0x210] sm:$0xff]
        %v485 = vld [vmem:[%s257 + $0x218] sm:$0xff]
        %v486 = vld [vmem:[%s257 + $0x220] sm:$0xff]
        %v487 = vld [vmem:[%s257 + $0x228] sm:$0xff]
        %v488 = vld [vmem:[%s257 + $0x230] sm:$0xff]
        %v489 = vld [vmem:[%s257 + $0x238] sm:$0xff]
        %v490 = vld [vmem:[%s257 + $0x240] sm:$0xff]
        %v491 = vld [vmem:[%s257 + $0x248] sm:$0xff]
        %v492 = vld [vmem:[%s257 + $0x250] sm:$0xff]
        %v493 = vld [vmem:[%s257 + $0x258] sm:$0xff]
        %v494 = vld [vmem:[%s257 + $0x260] sm:$0xff]
        %v495 = vld [vmem:[%s257 + $0x268] sm:$0xff]
        %v496 = vld [vmem:[%s257 + $0x270] sm:$0xff]
        %v497 = vld [vmem:[%s257 + $0x278] sm:$0xff]
        %v498 = vld [vmem:[%s257 + $0x280] sm:$0xff]
        %v499 = vld [vmem:[%s257 + $0x288] sm:$0xff]
        %v500 = vld [vmem:[%s257 + $0x290] sm:$0xff]
        %v501 = vld [vmem:[%s257 + $0x298] sm:$0xff]
        %v502 = vld [vmem:[%s257 + $0x2a0] sm:$0xff]
        %v503 = vld [vmem:[%s257 + $0x2a8] sm:$0xff]
        %v504 = vld [vmem:[%s257 + $0x2b0] sm:$0xff]
        %v505 = vld [vmem:[%s257 + $0x2b8] sm:$0xff]
        %v506 = vld [vmem:[%s257 + $0x2c0] sm:$0xff]
        %v507 = vld [vmem:[%s257 + $0x2c8] sm:$0xff]
        %v508 = vld [vmem:[%s257 + $0x2d0] sm:$0xff]
        %v509 = vld [vmem:[%s257 + $0x2d8] sm:$0xff]
        %v510 = vld [vmem:[%s257 + $0x2e0] sm:$0xff]
        %v511 = vld [vmem:[%s257 + $0x2e8] sm:$0xff]
        %v512 = vld [vmem:[%s257 + $0x2f0] sm:$0xff]
        %v513 = vld [vmem:[%s257 + $0x2f8] sm:$0xff]
        %v514 = vld [vmem:[%s257 + $0x300] sm:$0xff]
        %v515 = vld [vmem:[%s257 + $0x308] sm:$0xff]
        %v516 = vld [vmem:[%s257 + $0x310] sm:$0xff]
        %v517 = vld [vmem:[%s257 + $0x318] sm:$0xff]
        %v518 = vld [vmem:[%s257 + $0x320] sm:$0xff]
        %v519 = vld [vmem:[%s257 + $0x328] sm:$0xff]
        %v520 = vld [vmem:[%s257 + $0x330] sm:$0xff]
        %v521 = vld [vmem:[%s257 + $0x338] sm:$0xff]
        %v522 = vld [vmem:[%s257 + $0x340] sm:$0xff]
        %v523 = vld [vmem:[%s257 + $0x348] sm:$0xff]
        %v524 = vld [vmem:[%s257 + $0x350] sm:$0xff]
        %v525 = vld [vmem:[%s257 + $0x358] sm:$0xff]
        %v526 = vld [vmem:[%s257 + $0x360] sm:$0xff]
        %v527 = vld [vmem:[%s257 + $0x368] sm:$0xff]
        %v528 = vld [vmem:[%s257 + $0x370] sm:$0xff]
        %v529 = vld [vmem:[%s257 + $0x378] sm:$0xff]
        %v530 = vld [vmem:[%s257 + $0x380] sm:$0xff]
        %v531 = vld [vmem:[%s257 + $0x388] sm:$0xff]
        %v532 = vld [vmem:[%s257 + $0x390] sm:$0xff]
        %v533 = vld [vmem:[%s257 + $0x398] sm:$0xff]
        %v534 = vld [vmem:[%s257 + $0x3a0] sm:$0xff]
        %v535 = vld [vmem:[%s257 + $0x3a8] sm:$0xff]
        %v536 = vld [vmem:[%s257 + $0x3b0] sm:$0xff]
        %v537 = vld [vmem:[%s257 + $0x3b8] sm:$0xff]
        %v538 = vld [vmem:[%s257 + $0x3c0] sm:$0xff]
        %v539 = vld [vmem:[%s257 + $0x3c8] sm:$0xff]
        %v540 = vld [vmem:[%s257 + $0x3d0] sm:$0xff]
        %v541 = vld [vmem:[%s257 + $0x3d8] sm:$0xff]
        %v542 = vld [vmem:[%s257 + $0x3e0] sm:$0xff]
        %v543 = vld [vmem:[%s257 + $0x3e8] sm:$0xff]
        %v544 = vld [vmem:[%s257 + $0x3f0] sm:$0xff]
        %v545 = vld [vmem:[%s257 + $0x3f8] sm:$0xff]
        %v546 = vld [vmem:[%s257 + $0x400] sm:$0xff]
        %v547 = vld [vmem:[%s257 + $0x408] sm:$0xff]
        %v548 = vld [vmem:[%s257 + $0x410] sm:$0xff]
        %v549 = vld [vmem:[%s257 + $0x418] sm:$0xff]
        %v550 = vld [vmem:[%s257 + $0x420] sm:$0xff]
        %v551 = vld [vmem:[%s257 + $0x428] sm:$0xff]
        %v552 = vld [vmem:[%s257 + $0x430] sm:$0xff]
        %v553 = vld [vmem:[%s257 + $0x438] sm:$0xff]
        %v554 = vld [vmem:[%s257 + $0x440] sm:$0xff]
        %v555 = vld [vmem:[%s257 + $0x448] sm:$0xff]
        %v556 = vld [vmem:[%s257 + $0x450] sm:$0xff]
        %v557 = vld [vmem:[%s257 + $0x458] sm:$0xff]
        %v558 = vld [vmem:[%s257 + $0x460] sm:$0xff]
        %v559 = vld [vmem:[%s257 + $0x468] sm:$0xff]
        %v560 = vld [vmem:[%s257 + $0x470] sm:$0xff]
        %v561 = vld [vmem:[%s257 + $0x478] sm:$0xff]
        %562 = vmatpush.msra.mxu0 %v433
        %563 = vmatpush.msra.mxu0 %v432
        %564 = vmatpush.msra.mxu0 %v431
        %565 = vmatpush.msra.mxu0 %v430
        %566 = vmatpush.msra.mxu0 %v429
        %567 = vmatpush.msra.mxu0 %v428
        %568 = vmatpush.msra.mxu0 %v427
        %569 = vmatpush.msra.mxu0 %v426
        %570 = vmatpush.msra.mxu0 %v425
        %571 = vmatpush.msra.mxu0 %v424
        %572 = vmatpush.msra.mxu0 %v423
        %573 = vmatpush.msra.mxu0 %v422
        %574 = vmatpush.msra.mxu0 %v421
        %575 = vmatpush.msra.mxu0 %v420
        %576 = vmatpush.msra.mxu0 %v419
        %577 = vmatpush.msra.mxu0 %v418
        %578 = vmatmul.f32.gmra.mxu0 %v268
        %v579 = vpop.f32.mrf.mxu0
        %v580 = vadd.f32 0.0, %v579
        %581 = vmatmul.f32.gmra.mxu0 %v269
        %v582 = vpop.f32.mrf.mxu0
        %v583 = vadd.f32 0.0, %v582
        %584 = vmatmul.f32.gmra.mxu0 %v270
        %v585 = vpop.f32.mrf.mxu0
        %v586 = vadd.f32 0.0, %v585
        %587 = vmatmul.f32.gmra.mxu0 %v271
        %v588 = vpop.f32.mrf.mxu0
        %v589 = vadd.f32 0.0, %v588
        %590 = vmatmul.f32.gmra.mxu0 %v272
        %v591 = vpop.f32.mrf.mxu0
        %v592 = vadd.f32 0.0, %v591
        %593 = vmatmul.f32.gmra.mxu0 %v273
        %v594 = vpop.f32.mrf.mxu0
        %v595 = vadd.f32 0.0, %v594
        %596 = vmatmul.f32.gmra.mxu0 %v274
        %v597 = vpop.f32.mrf.mxu0
        %v598 = vadd.f32 0.0, %v597
        %599 = vmatmul.f32.gmra.mxu0 %v275
        %v600 = vpop.f32.mrf.mxu0
        %v601 = vadd.f32 0.0, %v600
        %602 = vmatmul.f32.gmra.mxu0 %v276
        %v603 = vpop.f32.mrf.mxu0
        %v604 = vadd.f32 0.0, %v603
        %605 = vmatmul.f32.gmra.mxu0 %v277
        %v606 = vpop.f32.mrf.mxu0
        %v607 = vadd.f32 0.0, %v606
        %608 = vmatmul.f32.gmra.mxu0 %v278
        %v609 = vpop.f32.mrf.mxu0
        %v610 = vadd.f32 0.0, %v609
        %611 = vmatmul.f32.gmra.mxu0 %v279
        %v612 = vpop.f32.mrf.mxu0
        %v613 = vadd.f32 0.0, %v612
        %614 = vmatmul.f32.gmra.mxu0 %v280
        %v615 = vpop.f32.mrf.mxu0
        %v616 = vadd.f32 0.0, %v615
        %617 = vmatmul.f32.gmra.mxu0 %v281
        %v618 = vpop.f32.mrf.mxu0
        %v619 = vadd.f32 0.0, %v618
        %620 = vmatmul.f32.gmra.mxu0 %v282
        %v621 = vpop.f32.mrf.mxu0
        %v622 = vadd.f32 0.0, %v621
        %623 = vmatmul.f32.gmra.mxu0 %v283
        %v624 = vpop.f32.mrf.mxu0
        %v625 = vadd.f32 0.0, %v624
        %626 = vdwg.mxu0
        %627 = vmatpush.msra.mxu0 %v449
        %628 = vmatpush.msra.mxu0 %v448
        %629 = vmatpush.msra.mxu0 %v447
        %630 = vmatpush.msra.mxu0 %v446
        %631 = vmatpush.msra.mxu0 %v445
        %632 = vmatpush.msra.mxu0 %v444
        %633 = vmatpush.msra.mxu0 %v443
        %634 = vmatpush.msra.mxu0 %v442
        %635 = vmatpush.msra.mxu0 %v441
        %636 = vmatpush.msra.mxu0 %v440
        %637 = vmatpush.msra.mxu0 %v439
        %638 = vmatpush.msra.mxu0 %v438
        %639 = vmatpush.msra.mxu0 %v437
        %640 = vmatpush.msra.mxu0 %v436
        %641 = vmatpush.msra.mxu0 %v435
        %642 = vmatpush.msra.mxu0 %v434
        %643 = vmatmul.f32.gmra.mxu0 %v284
        %v644 = vpop.f32.mrf.mxu0
        %v645 = vadd.f32 %v580, %v644
        %646 = vmatmul.f32.gmra.mxu0 %v285
        %v647 = vpop.f32.mrf.mxu0
        %v648 = vadd.f32 %v583, %v647
        %649 = vmatmul.f32.gmra.mxu0 %v286
        %v650 = vpop.f32.mrf.mxu0
        %v651 = vadd.f32 %v586, %v650
        %652 = vmatmul.f32.gmra.mxu0 %v287
        %v653 = vpop.f32.mrf.mxu0
        %v654 = vadd.f32 %v589, %v653
        %655 = vmatmul.f32.gmra.mxu0 %v288
        %v656 = vpop.f32.mrf.mxu0
        %v657 = vadd.f32 %v592, %v656
        %658 = vmatmul.f32.gmra.mxu0 %v289
        %v659 = vpop.f32.mrf.mxu0
        %v660 = vadd.f32 %v595, %v659
        %661 = vmatmul.f32.gmra.mxu0 %v290
        %v662 = vpop.f32.mrf.mxu0
        %v663 = vadd.f32 %v598, %v662
        %664 = vmatmul.f32.gmra.mxu0 %v291
        %v665 = vpop.f32.mrf.mxu0
        %v666 = vadd.f32 %v601, %v665
        %667 = vmatmul.f32.gmra.mxu0 %v292
        %v668 = vpop.f32.mrf.mxu0
        %v669 = vadd.f32 %v604, %v668
        %670 = vmatmul.f32.gmra.mxu0 %v293
        %v671 = vpop.f32.mrf.mxu0
        %v672 = vadd.f32 %v607, %v671
        %673 = vmatmul.f32.gmra.mxu0 %v294
        %v674 = vpop.f32.mrf.mxu0
        %v675 = vadd.f32 %v610, %v674
        %676 = vmatmul.f32.gmra.mxu0 %v295
        %v677 = vpop.f32.mrf.mxu0
        %v678 = vadd.f32 %v613, %v677
        %679 = vmatmul.f32.gmra.mxu0 %v296
        %v680 = vpop.f32.mrf.mxu0
        %v681 = vadd.f32 %v616, %v680
        %682 = vmatmul.f32.gmra.mxu0 %v297
        %v683 = vpop.f32.mrf.mxu0
        %v684 = vadd.f32 %v619, %v683
        %685 = vmatmul.f32.gmra.mxu0 %v298
        %v686 = vpop.f32.mrf.mxu0
        %v687 = vadd.f32 %v622, %v686
        %688 = vmatmul.f32.gmra.mxu0 %v299
        %v689 = vpop.f32.mrf.mxu0
        %v690 = vadd.f32 %v625, %v689
        %691 = vdwg.mxu0
        %692 = vmatpush.msra.mxu0 %v465
        %693 = vmatpush.msra.mxu0 %v464
        %694 = vmatpush.msra.mxu0 %v463
        %695 = vmatpush.msra.mxu0 %v462
        %696 = vmatpush.msra.mxu0 %v461
        %697 = vmatpush.msra.mxu0 %v460
        %698 = vmatpush.msra.mxu0 %v459
        %699 = vmatpush.msra.mxu0 %v458
        %700 = vmatpush.msra.mxu0 %v457
        %701 = vmatpush.msra.mxu0 %v456
        %702 = vmatpush.msra.mxu0 %v455
        %703 = vmatpush.msra.mxu0 %v454
        %704 = vmatpush.msra.mxu0 %v453
        %705 = vmatpush.msra.mxu0 %v452
        %706 = vmatpush.msra.mxu0 %v451
        %707 = vmatpush.msra.mxu0 %v450
        %708 = vmatmul.f32.gmra.mxu0 %v300
        %v709 = vpop.f32.mrf.mxu0
        %v710 = vadd.f32 %v645, %v709
        %711 = vmatmul.f32.gmra.mxu0 %v301
        %v712 = vpop.f32.mrf.mxu0
        %v713 = vadd.f32 %v648, %v712
        %714 = vmatmul.f32.gmra.mxu0 %v302
        %v715 = vpop.f32.mrf.mxu0
        %v716 = vadd.f32 %v651, %v715
        %717 = vmatmul.f32.gmra.mxu0 %v303
        %v718 = vpop.f32.mrf.mxu0
        %v719 = vadd.f32 %v654, %v718
        %720 = vmatmul.f32.gmra.mxu0 %v304
        %v721 = vpop.f32.mrf.mxu0
        %v722 = vadd.f32 %v657, %v721
        %723 = vmatmul.f32.gmra.mxu0 %v305
        %v724 = vpop.f32.mrf.mxu0
        %v725 = vadd.f32 %v660, %v724
        %726 = vmatmul.f32.gmra.mxu0 %v306
        %v727 = vpop.f32.mrf.mxu0
        %v728 = vadd.f32 %v663, %v727
        %729 = vmatmul.f32.gmra.mxu0 %v307
        %v730 = vpop.f32.mrf.mxu0
        %v731 = vadd.f32 %v666, %v730
        %732 = vmatmul.f32.gmra.mxu0 %v308
        %v733 = vpop.f32.mrf.mxu0
        %v734 = vadd.f32 %v669, %v733
        %735 = vmatmul.f32.gmra.mxu0 %v309
        %v736 = vpop.f32.mrf.mxu0
        %v737 = vadd.f32 %v672, %v736
        %738 = vmatmul.f32.gmra.mxu0 %v310
        %v739 = vpop.f32.mrf.mxu0
        %v740 = vadd.f32 %v675, %v739
        %741 = vmatmul.f32.gmra.mxu0 %v311
        %v742 = vpop.f32.mrf.mxu0
        %v743 = vadd.f32 %v678, %v742
        %744 = vmatmul.f32.gmra.mxu0 %v312
        %v745 = vpop.f32.mrf.mxu0
        %v746 = vadd.f32 %v681, %v745
        %747 = vmatmul.f32.gmra.mxu0 %v313
        %v748 = vpop.f32.mrf.mxu0
        %v749 = vadd.f32 %v684, %v748
        %750 = vmatmul.f32.gmra.mxu0 %v314
        %v751 = vpop.f32.mrf.mxu0
        %v752 = vadd.f32 %v687, %v751
        %753 = vmatmul.f32.gmra.mxu0 %v315
        %v754 = vpop.f32.mrf.mxu0
        %v755 = vadd.f32 %v690, %v754
        %756 = vdwg.mxu0
        %757 = vmatpush.msra.mxu0 %v481
        %758 = vmatpush.msra.mxu0 %v480
        %759 = vmatpush.msra.mxu0 %v479
        %760 = vmatpush.msra.mxu0 %v478
        %761 = vmatpush.msra.mxu0 %v477
        %762 = vmatpush.msra.mxu0 %v476
        %763 = vmatpush.msra.mxu0 %v475
        %764 = vmatpush.msra.mxu0 %v474
        %765 = vmatpush.msra.mxu0 %v473
        %766 = vmatpush.msra.mxu0 %v472
        %767 = vmatpush.msra.mxu0 %v471
        %768 = vmatpush.msra.mxu0 %v470
        %769 = vmatpush.msra.mxu0 %v469
        %770 = vmatpush.msra.mxu0 %v468
        %771 = vmatpush.msra.mxu0 %v467
        %772 = vmatpush.msra.mxu0 %v466
        %773 = vmatmul.f32.gmra.mxu0 %v319
        %v774 = vpop.f32.mrf.mxu0
        %v775 = vadd.f32 %v710, %v774
        %776 = vmatmul.f32.gmra.mxu0 %v320
        %v777 = vpop.f32.mrf.mxu0
        %v778 = vadd.f32 %v713, %v777
        %779 = vmatmul.f32.gmra.mxu0 %v321
        %v780 = vpop.f32.mrf.mxu0
        %v781 = vadd.f32 %v716, %v780
        %782 = vmatmul.f32.gmra.mxu0 %v322
        %v783 = vpop.f32.mrf.mxu0
        %v784 = vadd.f32 %v719, %v783
        %785 = vmatmul.f32.gmra.mxu0 %v323
        %v786 = vpop.f32.mrf.mxu0
        %v787 = vadd.f32 %v722, %v786
        %788 = vmatmul.f32.gmra.mxu0 %v324
        %v789 = vpop.f32.mrf.mxu0
        %v790 = vadd.f32 %v725, %v789
        %791 = vmatmul.f32.gmra.mxu0 %v325
        %v792 = vpop.f32.mrf.mxu0
        %v793 = vadd.f32 %v728, %v792
        %794 = vmatmul.f32.gmra.mxu0 %v326
        %v795 = vpop.f32.mrf.mxu0
        %v796 = vadd.f32 %v731, %v795
        %797 = vmatmul.f32.gmra.mxu0 %v327
        %v798 = vpop.f32.mrf.mxu0
        %v799 = vadd.f32 %v734, %v798
        %800 = vmatmul.f32.gmra.mxu0 %v328
        %v801 = vpop.f32.mrf.mxu0
        %v802 = vadd.f32 %v737, %v801
        %803 = vmatmul.f32.gmra.mxu0 %v329
        %v804 = vpop.f32.mrf.mxu0
        %v805 = vadd.f32 %v740, %v804
        %806 = vmatmul.f32.gmra.mxu0 %v330
        %v807 = vpop.f32.mrf.mxu0
        %v808 = vadd.f32 %v743, %v807
        %809 = vmatmul.f32.gmra.mxu0 %v331
        %v810 = vpop.f32.mrf.mxu0
        %v811 = vadd.f32 %v746, %v810
        %812 = vmatmul.f32.gmra.mxu0 %v332
        %v813 = vpop.f32.mrf.mxu0
        %v814 = vadd.f32 %v749, %v813
        %815 = vmatmul.f32.gmra.mxu0 %v333
        %v816 = vpop.f32.mrf.mxu0
        %v817 = vadd.f32 %v752, %v816
        %818 = vmatmul.f32.gmra.mxu0 %v334
        %v819 = vpop.f32.mrf.mxu0
        %v820 = vadd.f32 %v755, %v819
        %821 = vdwg.mxu0
        %822 = vmatpush.msra.mxu0 %v497
        %823 = vmatpush.msra.mxu0 %v496
        %824 = vmatpush.msra.mxu0 %v495
        %825 = vmatpush.msra.mxu0 %v494
        %826 = vmatpush.msra.mxu0 %v493
        %827 = vmatpush.msra.mxu0 %v492
        %828 = vmatpush.msra.mxu0 %v491
        %829 = vmatpush.msra.mxu0 %v490
        %830 = vmatpush.msra.mxu0 %v489
        %831 = vmatpush.msra.mxu0 %v488
        %832 = vmatpush.msra.mxu0 %v487
        %833 = vmatpush.msra.mxu0 %v486
        %834 = vmatpush.msra.mxu0 %v485
        %835 = vmatpush.msra.mxu0 %v484
        %836 = vmatpush.msra.mxu0 %v483
        %837 = vmatpush.msra.mxu0 %v482
        %838 = vmatmul.f32.gmra.mxu0 %v335
        %v839 = vpop.f32.mrf.mxu0
        %v840 = vadd.f32 %v775, %v839
        %841 = vmatmul.f32.gmra.mxu0 %v336
        %v842 = vpop.f32.mrf.mxu0
        %v843 = vadd.f32 %v778, %v842
        %844 = vmatmul.f32.gmra.mxu0 %v337
        %v845 = vpop.f32.mrf.mxu0
        %v846 = vadd.f32 %v781, %v845
        %847 = vmatmul.f32.gmra.mxu0 %v338
        %v848 = vpop.f32.mrf.mxu0
        %v849 = vadd.f32 %v784, %v848
        %850 = vmatmul.f32.gmra.mxu0 %v339
        %v851 = vpop.f32.mrf.mxu0
        %v852 = vadd.f32 %v787, %v851
        %853 = vmatmul.f32.gmra.mxu0 %v340
        %v854 = vpop.f32.mrf.mxu0
        %v855 = vadd.f32 %v790, %v854
        %856 = vmatmul.f32.gmra.mxu0 %v341
        %v857 = vpop.f32.mrf.mxu0
        %v858 = vadd.f32 %v793, %v857
        %859 = vmatmul.f32.gmra.mxu0 %v342
        %v860 = vpop.f32.mrf.mxu0
        %v861 = vadd.f32 %v796, %v860
        %862 = vmatmul.f32.gmra.mxu0 %v343
        %v863 = vpop.f32.mrf.mxu0
        %v864 = vadd.f32 %v799, %v863
        %865 = vmatmul.f32.gmra.mxu0 %v344
        %v866 = vpop.f32.mrf.mxu0
        %v867 = vadd.f32 %v802, %v866
        %868 = vmatmul.f32.gmra.mxu0 %v345
        %v869 = vpop.f32.mrf.mxu0
        %v870 = vadd.f32 %v805, %v869
        %871 = vmatmul.f32.gmra.mxu0 %v346
        %v872 = vpop.f32.mrf.mxu0
        %v873 = vadd.f32 %v808, %v872
        %874 = vmatmul.f32.gmra.mxu0 %v347
        %v875 = vpop.f32.mrf.mxu0
        %v876 = vadd.f32 %v811, %v875
        %877 = vmatmul.f32.gmra.mxu0 %v348
        %v878 = vpop.f32.mrf.mxu0
        %v879 = vadd.f32 %v814, %v878
        %880 = vmatmul.f32.gmra.mxu0 %v349
        %v881 = vpop.f32.mrf.mxu0
        %v882 = vadd.f32 %v817, %v881
        %883 = vmatmul.f32.gmra.mxu0 %v350
        %v884 = vpop.f32.mrf.mxu0
        %v885 = vadd.f32 %v820, %v884
        %886 = vdwg.mxu0
        %887 = vmatpush.msra.mxu0 %v513
        %888 = vmatpush.msra.mxu0 %v512
        %889 = vmatpush.msra.mxu0 %v511
        %890 = vmatpush.msra.mxu0 %v510
        %891 = vmatpush.msra.mxu0 %v509
        %892 = vmatpush.msra.mxu0 %v508
        %893 = vmatpush.msra.mxu0 %v507
        %894 = vmatpush.msra.mxu0 %v506
        %895 = vmatpush.msra.mxu0 %v505
        %896 = vmatpush.msra.mxu0 %v504
        %897 = vmatpush.msra.mxu0 %v503
        %898 = vmatpush.msra.mxu0 %v502
        %899 = vmatpush.msra.mxu0 %v501
        %900 = vmatpush.msra.mxu0 %v500
        %901 = vmatpush.msra.mxu0 %v499
        %902 = vmatpush.msra.mxu0 %v498
        %903 = vmatmul.f32.gmra.mxu0 %v351
        %v904 = vpop.f32.mrf.mxu0
        %v905 = vadd.f32 %v840, %v904
        %906 = vmatmul.f32.gmra.mxu0 %v352
        %v907 = vpop.f32.mrf.mxu0
        %v908 = vadd.f32 %v843, %v907
        %909 = vmatmul.f32.gmra.mxu0 %v353
        %v910 = vpop.f32.mrf.mxu0
        %v911 = vadd.f32 %v846, %v910
        %912 = vmatmul.f32.gmra.mxu0 %v354
        %v913 = vpop.f32.mrf.mxu0
        %v914 = vadd.f32 %v849, %v913
        %915 = vmatmul.f32.gmra.mxu0 %v355
        %v916 = vpop.f32.mrf.mxu0
        %v917 = vadd.f32 %v852, %v916
        %918 = vmatmul.f32.gmra.mxu0 %v356
        %v919 = vpop.f32.mrf.mxu0
        %v920 = vadd.f32 %v855, %v919
        %921 = vmatmul.f32.gmra.mxu0 %v357
        %v922 = vpop.f32.mrf.mxu0
        %v923 = vadd.f32 %v858, %v922
        %924 = vmatmul.f32.gmra.mxu0 %v358
        %v925 = vpop.f32.mrf.mxu0
        %v926 = vadd.f32 %v861, %v925
        %927 = vmatmul.f32.gmra.mxu0 %v359
        %v928 = vpop.f32.mrf.mxu0
        %v929 = vadd.f32 %v864, %v928
        %930 = vmatmul.f32.gmra.mxu0 %v360
        %v931 = vpop.f32.mrf.mxu0
        %v932 = vadd.f32 %v867, %v931
        %933 = vmatmul.f32.gmra.mxu0 %v361
        %v934 = vpop.f32.mrf.mxu0
        %v935 = vadd.f32 %v870, %v934
        %936 = vmatmul.f32.gmra.mxu0 %v362
        %v937 = vpop.f32.mrf.mxu0
        %v938 = vadd.f32 %v873, %v937
        %939 = vmatmul.f32.gmra.mxu0 %v363
        %v940 = vpop.f32.mrf.mxu0
        %v941 = vadd.f32 %v876, %v940
        %942 = vmatmul.f32.gmra.mxu0 %v364
        %v943 = vpop.f32.mrf.mxu0
        %v944 = vadd.f32 %v879, %v943
        %945 = vmatmul.f32.gmra.mxu0 %v365
        %v946 = vpop.f32.mrf.mxu0
        %v947 = vadd.f32 %v882, %v946
        %948 = vmatmul.f32.gmra.mxu0 %v366
        %v949 = vpop.f32.mrf.mxu0
        %v950 = vadd.f32 %v885, %v949
        %951 = vdwg.mxu0
        %952 = vmatpush.msra.mxu0 %v529
        %953 = vmatpush.msra.mxu0 %v528
        %954 = vmatpush.msra.mxu0 %v527
        %955 = vmatpush.msra.mxu0 %v526
        %956 = vmatpush.msra.mxu0 %v525
        %957 = vmatpush.msra.mxu0 %v524
        %958 = vmatpush.msra.mxu0 %v523
        %959 = vmatpush.msra.mxu0 %v522
        %960 = vmatpush.msra.mxu0 %v521
        %961 = vmatpush.msra.mxu0 %v520
        %962 = vmatpush.msra.mxu0 %v519
        %963 = vmatpush.msra.mxu0 %v518
        %964 = vmatpush.msra.mxu0 %v517
        %965 = vmatpush.msra.mxu0 %v516
        %966 = vmatpush.msra.mxu0 %v515
        %967 = vmatpush.msra.mxu0 %v514
        %968 = vmatmul.f32.gmra.mxu0 %v370
        %v969 = vpop.f32.mrf.mxu0
        %v970 = vadd.f32 %v905, %v969
        %971 = vmatmul.f32.gmra.mxu0 %v371
        %v972 = vpop.f32.mrf.mxu0
        %v973 = vadd.f32 %v908, %v972
        %974 = vmatmul.f32.gmra.mxu0 %v372
        %v975 = vpop.f32.mrf.mxu0
        %v976 = vadd.f32 %v911, %v975
        %977 = vmatmul.f32.gmra.mxu0 %v373
        %v978 = vpop.f32.mrf.mxu0
        %v979 = vadd.f32 %v914, %v978
        %980 = vmatmul.f32.gmra.mxu0 %v374
        %v981 = vpop.f32.mrf.mxu0
        %v982 = vadd.f32 %v917, %v981
        %983 = vmatmul.f32.gmra.mxu0 %v375
        %v984 = vpop.f32.mrf.mxu0
        %v985 = vadd.f32 %v920, %v984
        %986 = vmatmul.f32.gmra.mxu0 %v376
        %v987 = vpop.f32.mrf.mxu0
        %v988 = vadd.f32 %v923, %v987
        %989 = vmatmul.f32.gmra.mxu0 %v377
        %v990 = vpop.f32.mrf.mxu0
        %v991 = vadd.f32 %v926, %v990
        %992 = vmatmul.f32.gmra.mxu0 %v378
        %v993 = vpop.f32.mrf.mxu0
        %v994 = vadd.f32 %v929, %v993
        %995 = vmatmul.f32.gmra.mxu0 %v379
        %v996 = vpop.f32.mrf.mxu0
        %v997 = vadd.f32 %v932, %v996
        %998 = vmatmul.f32.gmra.mxu0 %v380
        %v999 = vpop.f32.mrf.mxu0
        %v1000 = vadd.f32 %v935, %v999
        %1001 = vmatmul.f32.gmra.mxu0 %v381
        %v1002 = vpop.f32.mrf.mxu0
        %v1003 = vadd.f32 %v938, %v1002
        %1004 = vmatmul.f32.gmra.mxu0 %v382
        %v1005 = vpop.f32.mrf.mxu0
        %v1006 = vadd.f32 %v941, %v1005
        %1007 = vmatmul.f32.gmra.mxu0 %v383
        %v1008 = vpop.f32.mrf.mxu0
        %v1009 = vadd.f32 %v944, %v1008
        %1010 = vmatmul.f32.gmra.mxu0 %v384
        %v1011 = vpop.f32.mrf.mxu0
        %v1012 = vadd.f32 %v947, %v1011
        %1013 = vmatmul.f32.gmra.mxu0 %v385
        %v1014 = vpop.f32.mrf.mxu0
        %v1015 = vadd.f32 %v950, %v1014
        %1016 = vdwg.mxu0
        %1017 = vmatpush.msra.mxu0 %v545
        %1018 = vmatpush.msra.mxu0 %v544
        %1019 = vmatpush.msra.mxu0 %v543
        %1020 = vmatpush.msra.mxu0 %v542
        %1021 = vmatpush.msra.mxu0 %v541
        %1022 = vmatpush.msra.mxu0 %v540
        %1023 = vmatpush.msra.mxu0 %v539
        %1024 = vmatpush.msra.mxu0 %v538
        %1025 = vmatpush.msra.mxu0 %v537
        %1026 = vmatpush.msra.mxu0 %v536
        %1027 = vmatpush.msra.mxu0 %v535
        %1028 = vmatpush.msra.mxu0 %v534
        %1029 = vmatpush.msra.mxu0 %v533
        %1030 = vmatpush.msra.mxu0 %v532
        %1031 = vmatpush.msra.mxu0 %v531
        %1032 = vmatpush.msra.mxu0 %v530
        %1033 = vmatmul.f32.gmra.mxu0 %v386
        %v1034 = vpop.f32.mrf.mxu0
        %v1035 = vadd.f32 %v970, %v1034
        %1036 = vmatmul.f32.gmra.mxu0 %v387
        %v1037 = vpop.f32.mrf.mxu0
        %v1038 = vadd.f32 %v973, %v1037
        %1039 = vmatmul.f32.gmra.mxu0 %v388
        %v1040 = vpop.f32.mrf.mxu0
        %v1041 = vadd.f32 %v976, %v1040
        %1042 = vmatmul.f32.gmra.mxu0 %v389
        %v1043 = vpop.f32.mrf.mxu0
        %v1044 = vadd.f32 %v979, %v1043
        %1045 = vmatmul.f32.gmra.mxu0 %v390
        %v1046 = vpop.f32.mrf.mxu0
        %v1047 = vadd.f32 %v982, %v1046
        %1048 = vmatmul.f32.gmra.mxu0 %v391
        %v1049 = vpop.f32.mrf.mxu0
        %v1050 = vadd.f32 %v985, %v1049
        %1051 = vmatmul.f32.gmra.mxu0 %v392
        %v1052 = vpop.f32.mrf.mxu0
        %v1053 = vadd.f32 %v988, %v1052
        %1054 = vmatmul.f32.gmra.mxu0 %v393
        %v1055 = vpop.f32.mrf.mxu0
        %v1056 = vadd.f32 %v991, %v1055
        %1057 = vmatmul.f32.gmra.mxu0 %v394
        %v1058 = vpop.f32.mrf.mxu0
        %v1059 = vadd.f32 %v994, %v1058
        %1060 = vmatmul.f32.gmra.mxu0 %v395
        %v1061 = vpop.f32.mrf.mxu0
        %v1062 = vadd.f32 %v997, %v1061
        %1063 = vmatmul.f32.gmra.mxu0 %v396
        %v1064 = vpop.f32.mrf.mxu0
        %v1065 = vadd.f32 %v1000, %v1064
        %1066 = vmatmul.f32.gmra.mxu0 %v397
        %v1067 = vpop.f32.mrf.mxu0
        %v1068 = vadd.f32 %v1003, %v1067
        %1069 = vmatmul.f32.gmra.mxu0 %v398
        %v1070 = vpop.f32.mrf.mxu0
        %v1071 = vadd.f32 %v1006, %v1070
        %1072 = vmatmul.f32.gmra.mxu0 %v399
        %v1073 = vpop.f32.mrf.mxu0
        %v1074 = vadd.f32 %v1009, %v1073
        %1075 = vmatmul.f32.gmra.mxu0 %v400
        %v1076 = vpop.f32.mrf.mxu0
        %v1077 = vadd.f32 %v1012, %v1076
        %1078 = vmatmul.f32.gmra.mxu0 %v401
        %v1079 = vpop.f32.mrf.mxu0
        %v1080 = vadd.f32 %v1015, %v1079
        %1081 = vdwg.mxu0
        %1082 = vmatpush.msra.mxu0 %v561
        %1083 = vmatpush.msra.mxu0 %v560
        %1084 = vmatpush.msra.mxu0 %v559
        %1085 = vmatpush.msra.mxu0 %v558
        %1086 = vmatpush.msra.mxu0 %v557
        %1087 = vmatpush.msra.mxu0 %v556
        %1088 = vmatpush.msra.mxu0 %v555
        %1089 = vmatpush.msra.mxu0 %v554
        %1090 = vmatpush.msra.mxu0 %v553
        %1091 = vmatpush.msra.mxu0 %v552
        %1092 = vmatpush.msra.mxu0 %v551
        %1093 = vmatpush.msra.mxu0 %v550
        %1094 = vmatpush.msra.mxu0 %v549
        %1095 = vmatpush.msra.mxu0 %v548
        %1096 = vmatpush.msra.mxu0 %v547
        %1097 = vmatpush.msra.mxu0 %v546
        %1098 = vmatmul.f32.gmra.mxu0 %v402
        %v1099 = vpop.f32.mrf.mxu0
        %v1100 = vadd.f32 %v1035, %v1099
        %1101 = vmatmul.f32.gmra.mxu0 %v403
        %v1102 = vpop.f32.mrf.mxu0
        %v1103 = vadd.f32 %v1038, %v1102
        %1104 = vmatmul.f32.gmra.mxu0 %v404
        %v1105 = vpop.f32.mrf.mxu0
        %v1106 = vadd.f32 %v1041, %v1105
        %1107 = vmatmul.f32.gmra.mxu0 %v405
        %v1108 = vpop.f32.mrf.mxu0
        %v1109 = vadd.f32 %v1044, %v1108
        %1110 = vmatmul.f32.gmra.mxu0 %v406
        %v1111 = vpop.f32.mrf.mxu0
        %v1112 = vadd.f32 %v1047, %v1111
        %1113 = vmatmul.f32.gmra.mxu0 %v407
        %v1114 = vpop.f32.mrf.mxu0
        %v1115 = vadd.f32 %v1050, %v1114
        %1116 = vmatmul.f32.gmra.mxu0 %v408
        %v1117 = vpop.f32.mrf.mxu0
        %v1118 = vadd.f32 %v1053, %v1117
        %1119 = vmatmul.f32.gmra.mxu0 %v409
        %v1120 = vpop.f32.mrf.mxu0
        %v1121 = vadd.f32 %v1056, %v1120
        %1122 = vmatmul.f32.gmra.mxu0 %v410
        %v1123 = vpop.f32.mrf.mxu0
        %v1124 = vadd.f32 %v1059, %v1123
        %1125 = vmatmul.f32.gmra.mxu0 %v411
        %v1126 = vpop.f32.mrf.mxu0
        %v1127 = vadd.f32 %v1062, %v1126
        %1128 = vmatmul.f32.gmra.mxu0 %v412
        %v1129 = vpop.f32.mrf.mxu0
        %v1130 = vadd.f32 %v1065, %v1129
        %1131 = vmatmul.f32.gmra.mxu0 %v413
        %v1132 = vpop.f32.mrf.mxu0
        %v1133 = vadd.f32 %v1068, %v1132
        %1134 = vmatmul.f32.gmra.mxu0 %v414
        %v1135 = vpop.f32.mrf.mxu0
        %v1136 = vadd.f32 %v1071, %v1135
        %1137 = vmatmul.f32.gmra.mxu0 %v415
        %v1138 = vpop.f32.mrf.mxu0
        %v1139 = vadd.f32 %v1074, %v1138
        %1140 = vmatmul.f32.gmra.mxu0 %v416
        %v1141 = vpop.f32.mrf.mxu0
        %v1142 = vadd.f32 %v1077, %v1141
        %1143 = vmatmul.f32.gmra.mxu0 %v417
        %v1144 = vpop.f32.mrf.mxu0
        %v1145 = vadd.f32 %v1080, %v1144
        %1146 = vdwg.mxu0
        %v1147 = vld [vmem:[%s260] sm:$0x1]
        %v1149 = vperm.slane %v1147, 0
        %v1151 = vmul.f32 %v1100, %v1149
        %v1152 = vmul.f32 %v1103, %v1149
        %v1153 = vmul.f32 %v1106, %v1149
        %v1154 = vmul.f32 %v1109, %v1149
        %v1155 = vmul.f32 %v1112, %v1149
        %v1156 = vmul.f32 %v1115, %v1149
        %v1157 = vmul.f32 %v1118, %v1149
        %v1158 = vmul.f32 %v1121, %v1149
        %v1159 = vmul.f32 %v1124, %v1149
        %v1160 = vmul.f32 %v1127, %v1149
        %v1161 = vmul.f32 %v1130, %v1149
        %v1162 = vmul.f32 %v1133, %v1149
        %v1163 = vmul.f32 %v1136, %v1149
        %v1164 = vmul.f32 %v1139, %v1149
        %v1165 = vmul.f32 %v1142, %v1149
        %v1166 = vmul.f32 %v1145, %v1149
        %v1167 = vld [vmem:[%s263] sm:$0x1]
        %v1169 = vperm.slane %v1167, 0
        %v1171 = vadd.f32 %v1151, %v1169
        %v1172 = vadd.f32 %v1152, %v1169
        %v1173 = vadd.f32 %v1153, %v1169
        %v1174 = vadd.f32 %v1154, %v1169
        %v1175 = vadd.f32 %v1155, %v1169
        %v1176 = vadd.f32 %v1156, %v1169
        %v1177 = vadd.f32 %v1157, %v1169
        %v1178 = vadd.f32 %v1158, %v1169
        %v1179 = vadd.f32 %v1159, %v1169
        %v1180 = vadd.f32 %v1160, %v1169
        %v1181 = vadd.f32 %v1161, %v1169
        %v1182 = vadd.f32 %v1162, %v1169
        %v1183 = vadd.f32 %v1163, %v1169
        %v1184 = vadd.f32 %v1164, %v1169
        %v1185 = vadd.f32 %v1165, %v1169
        %v1186 = vadd.f32 %v1166, %v1169
        %vm1187 = vcmp.gt.f32.partialorder %v1171, 0.0
        %vm1188 = vcmp.gt.f32.partialorder %v1172, 0.0
        %vm1189 = vcmp.gt.f32.partialorder %v1173, 0.0
        %vm1190 = vcmp.gt.f32.partialorder %v1174, 0.0
        %vm1191 = vcmp.gt.f32.partialorder %v1175, 0.0
        %vm1192 = vcmp.gt.f32.partialorder %v1176, 0.0
        %vm1193 = vcmp.gt.f32.partialorder %v1177, 0.0
        %vm1194 = vcmp.gt.f32.partialorder %v1178, 0.0
        %vm1195 = vcmp.gt.f32.partialorder %v1179, 0.0
        %vm1196 = vcmp.gt.f32.partialorder %v1180, 0.0
        %vm1197 = vcmp.gt.f32.partialorder %v1181, 0.0
        %vm1198 = vcmp.gt.f32.partialorder %v1182, 0.0
        %vm1199 = vcmp.gt.f32.partialorder %v1183, 0.0
        %vm1200 = vcmp.gt.f32.partialorder %v1184, 0.0
        %vm1201 = vcmp.gt.f32.partialorder %v1185, 0.0
        %vm1202 = vcmp.gt.f32.partialorder %v1186, 0.0
        %v1203 = vmul.f32 %v1171, 0.1
        %v1204 = vmul.f32 %v1172, 0.1
        %v1205 = vmul.f32 %v1173, 0.1
        %v1206 = vmul.f32 %v1174, 0.1
        %v1207 = vmul.f32 %v1175, 0.1
        %v1208 = vmul.f32 %v1176, 0.1
        %v1209 = vmul.f32 %v1177, 0.1
        %v1210 = vmul.f32 %v1178, 0.1
        %v1211 = vmul.f32 %v1179, 0.1
        %v1212 = vmul.f32 %v1180, 0.1
        %v1213 = vmul.f32 %v1181, 0.1
        %v1214 = vmul.f32 %v1182, 0.1
        %v1215 = vmul.f32 %v1183, 0.1
        %v1216 = vmul.f32 %v1184, 0.1
        %v1217 = vmul.f32 %v1185, 0.1
        %v1218 = vmul.f32 %v1186, 0.1
        %v1219 = vsel %vm1187, %v1171, %v1203
        %v1220 = vsel %vm1188, %v1172, %v1204
        %v1221 = vsel %vm1189, %v1173, %v1205
        %v1222 = vsel %vm1190, %v1174, %v1206
        %v1223 = vsel %vm1191, %v1175, %v1207
        %v1224 = vsel %vm1192, %v1176, %v1208
        %v1225 = vsel %vm1193, %v1177, %v1209
        %v1226 = vsel %vm1194, %v1178, %v1210
        %v1227 = vsel %vm1195, %v1179, %v1211
        %v1228 = vsel %vm1196, %v1180, %v1212
        %v1229 = vsel %vm1197, %v1181, %v1213
        %v1230 = vsel %vm1198, %v1182, %v1214
        %v1231 = vsel %vm1199, %v1183, %v1215
        %v1232 = vsel %vm1200, %v1184, %v1216
        %v1233 = vsel %vm1201, %v1185, %v1217
        %v1234 = vsel %vm1202, %v1186, %v1218
        %1235 = vst [vmem:[%s248] sm:$0xff] %v1219
        %1236 = vst [vmem:[%s248 + $0x8] sm:$0xff] %v1220
        %1237 = vst [vmem:[%s248 + $0x10] sm:$0xff] %v1221
        %1238 = vst [vmem:[%s248 + $0x18] sm:$0xff] %v1222
        %1239 = vst [vmem:[%s248 + $0x20] sm:$0xff] %v1223
        %1240 = vst [vmem:[%s248 + $0x28] sm:$0xff] %v1224
        %1241 = vst [vmem:[%s248 + $0x30] sm:$0xff] %v1225
        %1242 = vst [vmem:[%s248 + $0x38] sm:$0xff] %v1226
        %1243 = vst [vmem:[%s248 + $0x40] sm:$0xff] %v1227
        %1244 = vst [vmem:[%s248 + $0x48] sm:$0xff] %v1228
        %1245 = vst [vmem:[%s248 + $0x50] sm:$0xff] %v1229
        %1246 = vst [vmem:[%s248 + $0x58] sm:$0xff] %v1230
        %1247 = vst [vmem:[%s248 + $0x60] sm:$0xff] %v1231
        %1248 = vst [vmem:[%s248 + $0x68] sm:$0xff] %v1232
        %1249 = vst [vmem:[%s248 + $0x70] sm:$0xff] %v1233
        %1250 = vst [vmem:[%s248 + $0x78] sm:$0xff] %v1234
        %s1251 = sand.u32 %s153, 1
        %s1252 = scalar_lea.sflag [#allocation3], %s1251
        %s1253 = sand.u32 %s153, 1
        %s1254 = smul.addr %s1253, 128
        %s1255 = scalar_lea.vmem [#allocation2], %s1254
        // Predicated region
        $region37: #{tpu_custom_call.1} parent=35 // pred_check
          %p1256 = pneg %p163
        $region38: #{tpu_custom_call.1} parent=35 // pred_check_branch
          %1258 = sbr.rel (%p1256) target = $region40
        $region39: #{tpu_custom_call.1} parent=35 // pred_region
          %s1259 = smul.u32 8, %s25
          %1261 = vsyncadd %s1252, 0
          %s1262 = smul.addr %s1259, 2
          %s1263 = sadd.s32 %s24, %s1262
          %s1264 = smul.addr %s23, 32
          %s1265 = sadd.s32 %s1263, %s1264
          %s1266 = smul.addr %s1265, 8
          %s1267 = scalar_lea.hbm %s4, %s1266
          %s1268 = sshll.u32 %s1255, 4
          %s1269 = int_to_ptr.vmem [resolvable:$true] %s1268
          %s1270 = sshll.u32 %s1267, 4
          %s1271 = int_to_ptr.hbm [resolvable:$true] %s1270
          %1276 = dma.vmem_to_hbm [thread:$0]  %s1269, 2048, %s1271, %s1252, 128, 128, 8
        $region40: #{tpu_custom_call.1} parent=35 // pred_fallthru
          _
      $region36: #{tpu_custom_call.1} parent=5 // pred_fallthru
        _
      %p1277 = scmp.le.s32.totalorder 2, %s13
      // Predicated region
      $region41: #{tpu_custom_call.1} parent=5 // pred_check
        %p1278 = pneg %p1277
      $region42: #{tpu_custom_call.1} parent=5 // pred_check_branch
        %1280 = sbr.rel (%p1278) target = $region44
      $region43: #{tpu_custom_call.1} parent=5 // pred_region
        %s1281 = ssub.s32 %s13, 2
        // Predicated region
        $region45: #{tpu_custom_call.1} parent=43 // pred_check
          %p1282 = pneg %p169
        $region46: #{tpu_custom_call.1} parent=43 // pred_check_branch
          %1284 = sbr.rel (%p1282) target = $region48
        $region47: #{tpu_custom_call.1} parent=43 // pred_region
          %s1285 = sand.u32 %s154, 1
          %s1286 = scalar_lea.sflag [#allocation3], %s1285
          %s1287 = sand.u32 %s154, 1
          %s1288 = smul.addr %s1287, 128
          %s1289 = scalar_lea.vmem [#allocation2], %s1288
          %1291 = dma.done %s1286, 2048
        $region48: #{tpu_custom_call.1} parent=43 // pred_fallthru
          _
      $region44: #{tpu_custom_call.1} parent=5 // pred_fallthru
        _
    $region6: #{tpu_custom_call.1} parent=1 // loop_footer
      %s17 = sadd.s32 1, %s13
    $region7: #{tpu_custom_call.1} parent=1 // loop_footer_branch
      %12 = sbr.rel target = $region3
    $region8: #{tpu_custom_call.1} parent=1 // loop_exit
      _
    %1292 = vsyncpa [#allocation3], 1
    %s1293 = scalar_lea.sflag [#allocation3], 1
    %1294 = vsyncpa %s1293, 1

</llo_original>
